<compile_context>
chip_gen: v6e
topology: v6e:2x2x1
jax: 0.10.0
libtpu: 0.0.40
codegen_flags: <defaults>
</compile_context>

<pallas_src>
import numpy as np
import jax
import jax.numpy as jnp
from jax.experimental import pallas as pl
from jax.experimental.pallas import tpu as pltpu


# ----------------------------------------------------------------------------
# Pallas kernel: strided Conv1d (1 -> N channels, kernel M, stride N, no bias),
# batch-folded, as one block-diagonal MXU matmul per (row-block, time-tile).
# ----------------------------------------------------------------------------
def _pqmf_analysis_kernel(xm_ref, xh_ref, w_ref, o_ref, slab_ref):
    """xm_ref  : (R, TILE_T)   folded polyphase frames of this time tile
                 (R = Bf*N rows: Bf batches x N polyphase components, time on lanes)
       xh_ref  : (R, 128)      frames just before this tile (garbage at time-tile 0)
       w_ref   : (R, K*R)      f32 block-diagonal (over the fold), tap-major-permuted
                 filters: w[f*N + n, k*R + f*N + r] = W[n, k*N + r]
       o_ref   : (R, TILE_T)   f32 output block (channels on sublanes, time on lanes)
       slab_ref: (K*R, TILE_T) VMEM scratch for the im2col slab
    """
    j = pl.program_id(1)                    # time-tile index
    rows = xm_ref.shape[0]                  # R = Bf*N
    tile_t = xm_ref.shape[1]
    k_frames = w_ref.shape[1] // rows       # K = M // N frame taps
    look = k_frames - 1                     # lookback frames needed (K - 1)

    main = xm_ref[...]                                       # (R, TILE_T) f32
    halo = xh_ref[:, xh_ref.shape[1] - look:]                # (R, K-1)    f32
    # Time-tile 0 looks into the ConstantPad1d((M-N, 0), 0) region -> zero the lookback.
    halo = jnp.where(j > 0, halo, 0.0)

    # im2col slab, tap-major: every store is a full R-row (8/16-sublane aligned),
    # lane-dense store at sublane offset k*R.
    #   slab[k*R + q, t] = x_fold[q, t + k - (K-1)]   (halo fill where t + k < K-1)
    for k in range(k_frames):               # static unroll over K taps
        shift = look - k                    # leading columns coming from the halo
        if shift == 0:
            slab_ref[k * rows:(k + 1) * rows, :] = main
        else:
            piece = jnp.concatenate(
                [halo[:, k:], main[:, :tile_t - shift]], axis=1)       # (R, TILE_T)
            slab_ref[k * rows:(k + 1) * rows, :] = piece

    # Single MXU matmul per tile; contraction depth K*R, lane-dense f32 output.
    o_ref[...] = jnp.dot(w_ref[...], slab_ref[...],
                         preferred_element_type=jnp.float32).astype(o_ref.dtype)


# ----------------------------------------------------------------------------
# Wrapper
# ----------------------------------------------------------------------------
def pqmf_forward(x, weight, N, M, *, max_tile_t=8192, batch_fold=None):
    """x: [B, 1, T] f32, weight: [N, 1, M] f32 (PyTorch Conv1d layout). Returns [B, N, T//N]."""
    B, C, T = x.shape
    assert C == 1, "PQMF.forward convolves a single input channel"
    assert M % N == 0 and T % N == 0
    K = M // N
    T_out = T // N
    assert T_out % 128 == 0 and (K - 1) <= 128, \
        "this kernel expects T//N to be a multiple of 128 and M//N - 1 <= 128"

    # ---- batch fold: pack Bf batches on the sublane axis (Bf*N multiple of 8).
    if batch_fold is None:
        batch_fold = 1
        for cand in (4, 2, 1):
            if B % cand == 0 and (cand * N) % 8 == 0:
                batch_fold = cand
                break
    Bf = batch_fold
    assert B % Bf == 0, "batch_fold must divide the batch size"
    R = Bf * N
    assert R % 8 == 0 or Bf == B, \
        "folded row block must be 8-sublane aligned or cover the full row extent"

    # ---- time tile: largest multiple-of-128 divisor of T_out capped at max_tile_t.
    # Larger tiles amortize the ~0.35 us/step grid overhead and shrink the halo
    # re-read fraction (128/tile_t); footprint stays well under v7x's 64 MiB VMEM.
    tile_t = min(max(128, (max_tile_t // 128) * 128), T_out)
    while T_out % tile_t:
        tile_t -= 128
    grid = (B // Bf, T_out // tile_t)
    halo_t = 128                      # lookback block; only its last K-1 frames are used

    # ---- polyphase deinterleave: [B,1,T] -> (B*N, T_out), time on the 128-lane axis.
    x_flat = jnp.transpose(x.reshape(B, T_out, N), (0, 2, 1)).reshape(B * N, T_out)

    # ---- block-diagonal, tap-major-permuted filter bank (built once on host, f32):
    #      w_bd[f*N + n, k*R + g*N + r] = (f == g) * W[n, k*N + r]
    Wk = weight[:, 0, :].astype(jnp.float32).reshape(N, K, N)          # [n, k, r]
    eye = jnp.eye(Bf, dtype=jnp.float32)
    w_bd = jnp.einsum("fg,nkr->fnkgr", eye, Wk).reshape(R, K * R)

    cost = pl.CostEstimate(
        flops=2 * B * N * M * T_out,
        transcendentals=0,
        bytes_accessed=int(x.size) * 4 + B * N * T_out * 4 + int(w_bd.size) * 4)

    out_flat = pl.pallas_call(
        _pqmf_analysis_kernel,
        out_shape=jax.ShapeDtypeStruct((B * N, T_out), jnp.float32),
        grid=grid,
        in_specs=[
            # main frames of this (row-block, time-tile)
            pl.BlockSpec((R, tile_t), lambda g, j: (g, j)),
            # lookback (halo) frames right before the tile; clamped to block 0 at j == 0
            # and zero-masked inside the kernel (reproduces the left zero pad exactly).
            pl.BlockSpec((R, halo_t),
                         lambda g, j: (g, jnp.maximum(j * (tile_t // halo_t) - 1, 0))),
            # full (tiny) filter bank, same block for every grid step
            pl.BlockSpec((R, K * R), lambda g, j: (0, 0)),
        ],
        out_specs=pl.BlockSpec((R, tile_t), lambda g, j: (g, j)),
        scratch_shapes=[pltpu.VMEM((K * R, tile_t), jnp.float32)],
        compiler_params=pltpu.CompilerParams(
            dimension_semantics=("parallel", "parallel")),
        cost_estimate=cost,
    )(x_flat, x_flat, w_bd)

    return out_flat.reshape(B, N, T_out)


# ----------------------------------------------------------------------------
# Deterministic analysis-filter synthesis (stand-in for f_{N}_{M}.mat)
# ----------------------------------------------------------------------------
def make_analysis_filters(N, M):
    n = np.arange(M, dtype=np.float64)
    proto = np.hanning(M)
    proto = proto / np.sum(proto)                            # prototype lowpass
    k = np.arange(N, dtype=np.float64)[:, None]
    phase = (2.0 * k + 1.0) * np.pi / (2.0 * N) * (n[None, :] - (M - 1) / 2.0) \
        + ((-1.0) ** k) * np.pi / 4.0
    h = 2.0 * proto[None, :] * np.cos(phase)                 # (N, M) cosine-modulated bank
    h = (h / N).astype(np.float32)                           # mimic data['f'] / N
    h = h[:, ::-1].copy()                                    # mimic flipud time reversal
    return jnp.asarray(h.reshape(N, 1, M))                   # Conv1d weight layout (O, I, K)


if __name__ == "__main__":
    N_sub, M_filt = 4, 64        # supported (N, M) = (4, 64)
    B, T = 4, 8192               # small audio clip; T_out = 2048 subband frames

    key = jax.random.PRNGKey(0)
    x = jax.random.normal(key, (B, 1, T), dtype=jnp.float32)
    weight = make_analysis_filters(N_sub, M_filt)            # (N, 1, M)

    # batch_fold=2, max_tile_t=1024 -> grid (2, 2): exercises the batch-fold row
    # blocking, the multi-tile halo path and the tile-0 left-zero-pad masking.
    out = pqmf_forward(x, weight, N_sub, M_filt, max_tile_t=1024, batch_fold=2)
    out = jax.block_until_ready(out)
    T_out = T // N_sub
    assert out.shape == (B, N_sub, T_out)

    # Host float64 reference of the exact PyTorch forward semantics:
    #   ConstantPad1d((M-N, 0), 0) -> Conv1d(1, N, kernel M, stride N, no bias).
    x_f = np.asarray(x, dtype=np.float64)[:, 0, :]
    w_f = np.asarray(weight, dtype=np.float64)[:, 0, :]
    pad = np.pad(x_f, ((0, 0), (M_filt - N_sub, 0)))
    ref = np.zeros((B, N_sub, T_out), dtype=np.float64)
    for t in range(T_out):
        seg = pad[:, t * N_sub:t * N_sub + M_filt]            # (B, M)
        ref[:, :, t] = seg @ w_f.T
    np.testing.assert_allclose(np.asarray(out), ref, rtol=1e-2, atol=5e-3)

    print("KERNEL_OK")
</pallas_src>

<mosaic_0001>
module attributes {stable_mosaic.version = 11 : i64} {
  func.func @_pqmf_analysis_kernel(%arg0: i32, %arg1: i32, %arg2: memref<8x1024xf32, #tpu.memory_space<vmem>>, %arg3: memref<8x128xf32, #tpu.memory_space<vmem>>, %arg4: memref<8x128xf32, #tpu.memory_space<vmem>>, %arg5: memref<8x1024xf32, #tpu.memory_space<vmem>>, %arg6: memref<128x1024xf32, #tpu.memory_space<vmem>>) attributes {dimension_semantics = [#tpu.dimension_semantics<parallel>, #tpu.dimension_semantics<parallel>], iteration_bounds = array<i64: 2, 2>, scalar_prefetch = 0 : i64, scratch_operands = 1 : i64, tpu.core_type = #tpu.core_type<tc>, window_params = [{transform_indices = @transform_0, window_bounds = array<i64: 8, 1024>}, {transform_indices = @transform_1, window_bounds = array<i64: 8, 128>}, {pipeline_mode = #tpu.pipeline_mode<synchronous>, transform_indices = @transform_2, window_bounds = array<i64: 8, 128>}, {transform_indices = @transform_3, window_bounds = array<i64: 8, 1024>}]} {
    %c0 = arith.constant 0 : index
    %c0_0 = arith.constant 0 : index
    %0 = vector.load %arg2[%c0, %c0_0] : memref<8x1024xf32, #tpu.memory_space<vmem>>, vector<8x1024xf32>
    %c0_1 = arith.constant 0 : index
    %c113 = arith.constant 113 : index
    %1 = vector.load %arg3[%c0_1, %c113] : memref<8x128xf32, #tpu.memory_space<vmem>>, vector<8x15xf32>
    %c0_i32 = arith.constant 0 : i32
    %2 = arith.cmpi sgt, %arg1, %c0_i32 : i32
    %cst = arith.constant 0.000000e+00 : f32
    %3 = vector.broadcast %cst : f32 to vector<8x15xf32>
    %4 = arith.select %2, %1, %3 : vector<8x15xf32>
    %5 = vector.extract_strided_slice %0 {offsets = [0, 0], sizes = [8, 1009], strides = [1, 1]} : vector<8x1024xf32> to vector<8x1009xf32>
    %6 = tpu.concatenate %4, %5 in 1 : vector<8x15xf32>, vector<8x1009xf32> -> vector<8x1024xf32>
    %c0_2 = arith.constant 0 : index
    %c0_3 = arith.constant 0 : index
    %7 = vector.load %arg6[%c0_2, %c0_3] : memref<128x1024xf32, #tpu.memory_space<vmem>>, vector<8x1024xf32>
    tpu.vector_store %arg6[%c0_2, %c0_3], %6 {strides = array<i32>} : memref<128x1024xf32, #tpu.memory_space<vmem>>, vector<8x1024xf32>,
    %8 = vector.extract_strided_slice %4 {offsets = [0, 1], sizes = [8, 14], strides = [1, 1]} : vector<8x15xf32> to vector<8x14xf32>
    %9 = vector.extract_strided_slice %0 {offsets = [0, 0], sizes = [8, 1010], strides = [1, 1]} : vector<8x1024xf32> to vector<8x1010xf32>
    %10 = tpu.concatenate %8, %9 in 1 : vector<8x14xf32>, vector<8x1010xf32> -> vector<8x1024xf32>
    %c8 = arith.constant 8 : index
    %c0_4 = arith.constant 0 : index
    %11 = vector.load %arg6[%c8, %c0_4] : memref<128x1024xf32, #tpu.memory_space<vmem>>, vector<8x1024xf32>
    tpu.vector_store %arg6[%c8, %c0_4], %10 {strides = array<i32>} : memref<128x1024xf32, #tpu.memory_space<vmem>>, vector<8x1024xf32>,
    %12 = vector.extract_strided_slice %4 {offsets = [0, 2], sizes = [8, 13], strides = [1, 1]} : vector<8x15xf32> to vector<8x13xf32>
    %13 = vector.extract_strided_slice %0 {offsets = [0, 0], sizes = [8, 1011], strides = [1, 1]} : vector<8x1024xf32> to vector<8x1011xf32>
    %14 = tpu.concatenate %12, %13 in 1 : vector<8x13xf32>, vector<8x1011xf32> -> vector<8x1024xf32>
    %c16 = arith.constant 16 : index
    %c0_5 = arith.constant 0 : index
    %15 = vector.load %arg6[%c16, %c0_5] : memref<128x1024xf32, #tpu.memory_space<vmem>>, vector<8x1024xf32>
    tpu.vector_store %arg6[%c16, %c0_5], %14 {strides = array<i32>} : memref<128x1024xf32, #tpu.memory_space<vmem>>, vector<8x1024xf32>,
    %16 = vector.extract_strided_slice %4 {offsets = [0, 3], sizes = [8, 12], strides = [1, 1]} : vector<8x15xf32> to vector<8x12xf32>
    %17 = vector.extract_strided_slice %0 {offsets = [0, 0], sizes = [8, 1012], strides = [1, 1]} : vector<8x1024xf32> to vector<8x1012xf32>
    %18 = tpu.concatenate %16, %17 in 1 : vector<8x12xf32>, vector<8x1012xf32> -> vector<8x1024xf32>
    %c24 = arith.constant 24 : index
    %c0_6 = arith.constant 0 : index
    %19 = vector.load %arg6[%c24, %c0_6] : memref<128x1024xf32, #tpu.memory_space<vmem>>, vector<8x1024xf32>
    tpu.vector_store %arg6[%c24, %c0_6], %18 {strides = array<i32>} : memref<128x1024xf32, #tpu.memory_space<vmem>>, vector<8x1024xf32>,
    %20 = vector.extract_strided_slice %4 {offsets = [0, 4], sizes = [8, 11], strides = [1, 1]} : vector<8x15xf32> to vector<8x11xf32>
    %21 = vector.extract_strided_slice %0 {offsets = [0, 0], sizes = [8, 1013], strides = [1, 1]} : vector<8x1024xf32> to vector<8x1013xf32>
    %22 = tpu.concatenate %20, %21 in 1 : vector<8x11xf32>, vector<8x1013xf32> -> vector<8x1024xf32>
    %c32 = arith.constant 32 : index
    %c0_7 = arith.constant 0 : index
    %23 = vector.load %arg6[%c32, %c0_7] : memref<128x1024xf32, #tpu.memory_space<vmem>>, vector<8x1024xf32>
    tpu.vector_store %arg6[%c32, %c0_7], %22 {strides = array<i32>} : memref<128x1024xf32, #tpu.memory_space<vmem>>, vector<8x1024xf32>,
    %24 = vector.extract_strided_slice %4 {offsets = [0, 5], sizes = [8, 10], strides = [1, 1]} : vector<8x15xf32> to vector<8x10xf32>
    %25 = vector.extract_strided_slice %0 {offsets = [0, 0], sizes = [8, 1014], strides = [1, 1]} : vector<8x1024xf32> to vector<8x1014xf32>
    %26 = tpu.concatenate %24, %25 in 1 : vector<8x10xf32>, vector<8x1014xf32> -> vector<8x1024xf32>
    %c40 = arith.constant 40 : index
    %c0_8 = arith.constant 0 : index
    %27 = vector.load %arg6[%c40, %c0_8] : memref<128x1024xf32, #tpu.memory_space<vmem>>, vector<8x1024xf32>
    tpu.vector_store %arg6[%c40, %c0_8], %26 {strides = array<i32>} : memref<128x1024xf32, #tpu.memory_space<vmem>>, vector<8x1024xf32>,
    %28 = vector.extract_strided_slice %4 {offsets = [0, 6], sizes = [8, 9], strides = [1, 1]} : vector<8x15xf32> to vector<8x9xf32>
    %29 = vector.extract_strided_slice %0 {offsets = [0, 0], sizes = [8, 1015], strides = [1, 1]} : vector<8x1024xf32> to vector<8x1015xf32>
    %30 = tpu.concatenate %28, %29 in 1 : vector<8x9xf32>, vector<8x1015xf32> -> vector<8x1024xf32>
    %c48 = arith.constant 48 : index
    %c0_9 = arith.constant 0 : index
    %31 = vector.load %arg6[%c48, %c0_9] : memref<128x1024xf32, #tpu.memory_space<vmem>>, vector<8x1024xf32>
    tpu.vector_store %arg6[%c48, %c0_9], %30 {strides = array<i32>} : memref<128x1024xf32, #tpu.memory_space<vmem>>, vector<8x1024xf32>,
    %32 = vector.extract_strided_slice %4 {offsets = [0, 7], sizes = [8, 8], strides = [1, 1]} : vector<8x15xf32> to vector<8x8xf32>
    %33 = vector.extract_strided_slice %0 {offsets = [0, 0], sizes = [8, 1016], strides = [1, 1]} : vector<8x1024xf32> to vector<8x1016xf32>
    %34 = tpu.concatenate %32, %33 in 1 : vector<8x8xf32>, vector<8x1016xf32> -> vector<8x1024xf32>
    %c56 = arith.constant 56 : index
    %c0_10 = arith.constant 0 : index
    %35 = vector.load %arg6[%c56, %c0_10] : memref<128x1024xf32, #tpu.memory_space<vmem>>, vector<8x1024xf32>
    tpu.vector_store %arg6[%c56, %c0_10], %34 {strides = array<i32>} : memref<128x1024xf32, #tpu.memory_space<vmem>>, vector<8x1024xf32>,
    %36 = vector.extract_strided_slice %4 {offsets = [0, 8], sizes = [8, 7], strides = [1, 1]} : vector<8x15xf32> to vector<8x7xf32>
    %37 = vector.extract_strided_slice %0 {offsets = [0, 0], sizes = [8, 1017], strides = [1, 1]} : vector<8x1024xf32> to vector<8x1017xf32>
    %38 = tpu.concatenate %36, %37 in 1 : vector<8x7xf32>, vector<8x1017xf32> -> vector<8x1024xf32>
    %c64 = arith.constant 64 : index
    %c0_11 = arith.constant 0 : index
    %39 = vector.load %arg6[%c64, %c0_11] : memref<128x1024xf32, #tpu.memory_space<vmem>>, vector<8x1024xf32>
    tpu.vector_store %arg6[%c64, %c0_11], %38 {strides = array<i32>} : memref<128x1024xf32, #tpu.memory_space<vmem>>, vector<8x1024xf32>,
    %40 = vector.extract_strided_slice %4 {offsets = [0, 9], sizes = [8, 6], strides = [1, 1]} : vector<8x15xf32> to vector<8x6xf32>
    %41 = vector.extract_strided_slice %0 {offsets = [0, 0], sizes = [8, 1018], strides = [1, 1]} : vector<8x1024xf32> to vector<8x1018xf32>
    %42 = tpu.concatenate %40, %41 in 1 : vector<8x6xf32>, vector<8x1018xf32> -> vector<8x1024xf32>
    %c72 = arith.constant 72 : index
    %c0_12 = arith.constant 0 : index
    %43 = vector.load %arg6[%c72, %c0_12] : memref<128x1024xf32, #tpu.memory_space<vmem>>, vector<8x1024xf32>
    tpu.vector_store %arg6[%c72, %c0_12], %42 {strides = array<i32>} : memref<128x1024xf32, #tpu.memory_space<vmem>>, vector<8x1024xf32>,
    %44 = vector.extract_strided_slice %4 {offsets = [0, 10], sizes = [8, 5], strides = [1, 1]} : vector<8x15xf32> to vector<8x5xf32>
    %45 = vector.extract_strided_slice %0 {offsets = [0, 0], sizes = [8, 1019], strides = [1, 1]} : vector<8x1024xf32> to vector<8x1019xf32>
    %46 = tpu.concatenate %44, %45 in 1 : vector<8x5xf32>, vector<8x1019xf32> -> vector<8x1024xf32>
    %c80 = arith.constant 80 : index
    %c0_13 = arith.constant 0 : index
    %47 = vector.load %arg6[%c80, %c0_13] : memref<128x1024xf32, #tpu.memory_space<vmem>>, vector<8x1024xf32>
    tpu.vector_store %arg6[%c80, %c0_13], %46 {strides = array<i32>} : memref<128x1024xf32, #tpu.memory_space<vmem>>, vector<8x1024xf32>,
    %48 = vector.extract_strided_slice %4 {offsets = [0, 11], sizes = [8, 4], strides = [1, 1]} : vector<8x15xf32> to vector<8x4xf32>
    %49 = vector.extract_strided_slice %0 {offsets = [0, 0], sizes = [8, 1020], strides = [1, 1]} : vector<8x1024xf32> to vector<8x1020xf32>
    %50 = tpu.concatenate %48, %49 in 1 : vector<8x4xf32>, vector<8x1020xf32> -> vector<8x1024xf32>
    %c88 = arith.constant 88 : index
    %c0_14 = arith.constant 0 : index
    %51 = vector.load %arg6[%c88, %c0_14] : memref<128x1024xf32, #tpu.memory_space<vmem>>, vector<8x1024xf32>
    tpu.vector_store %arg6[%c88, %c0_14], %50 {strides = array<i32>} : memref<128x1024xf32, #tpu.memory_space<vmem>>, vector<8x1024xf32>,
    %52 = vector.extract_strided_slice %4 {offsets = [0, 12], sizes = [8, 3], strides = [1, 1]} : vector<8x15xf32> to vector<8x3xf32>
    %53 = vector.extract_strided_slice %0 {offsets = [0, 0], sizes = [8, 1021], strides = [1, 1]} : vector<8x1024xf32> to vector<8x1021xf32>
    %54 = tpu.concatenate %52, %53 in 1 : vector<8x3xf32>, vector<8x1021xf32> -> vector<8x1024xf32>
    %c96 = arith.constant 96 : index
    %c0_15 = arith.constant 0 : index
    %55 = vector.load %arg6[%c96, %c0_15] : memref<128x1024xf32, #tpu.memory_space<vmem>>, vector<8x1024xf32>
    tpu.vector_store %arg6[%c96, %c0_15], %54 {strides = array<i32>} : memref<128x1024xf32, #tpu.memory_space<vmem>>, vector<8x1024xf32>,
    %56 = vector.extract_strided_slice %4 {offsets = [0, 13], sizes = [8, 2], strides = [1, 1]} : vector<8x15xf32> to vector<8x2xf32>
    %57 = vector.extract_strided_slice %0 {offsets = [0, 0], sizes = [8, 1022], strides = [1, 1]} : vector<8x1024xf32> to vector<8x1022xf32>
    %58 = tpu.concatenate %56, %57 in 1 : vector<8x2xf32>, vector<8x1022xf32> -> vector<8x1024xf32>
    %c104 = arith.constant 104 : index
    %c0_16 = arith.constant 0 : index
    %59 = vector.load %arg6[%c104, %c0_16] : memref<128x1024xf32, #tpu.memory_space<vmem>>, vector<8x1024xf32>
    tpu.vector_store %arg6[%c104, %c0_16], %58 {strides = array<i32>} : memref<128x1024xf32, #tpu.memory_space<vmem>>, vector<8x1024xf32>,
    %60 = vector.extract_strided_slice %4 {offsets = [0, 14], sizes = [8, 1], strides = [1, 1]} : vector<8x15xf32> to vector<8x1xf32>
    %61 = vector.extract_strided_slice %0 {offsets = [0, 0], sizes = [8, 1023], strides = [1, 1]} : vector<8x1024xf32> to vector<8x1023xf32>
    %62 = tpu.concatenate %60, %61 in 1 : vector<8x1xf32>, vector<8x1023xf32> -> vector<8x1024xf32>
    %c112 = arith.constant 112 : index
    %c0_17 = arith.constant 0 : index
    %63 = vector.load %arg6[%c112, %c0_17] : memref<128x1024xf32, #tpu.memory_space<vmem>>, vector<8x1024xf32>
    tpu.vector_store %arg6[%c112, %c0_17], %62 {strides = array<i32>} : memref<128x1024xf32, #tpu.memory_space<vmem>>, vector<8x1024xf32>,
    %c120 = arith.constant 120 : index
    %c0_18 = arith.constant 0 : index
    %64 = vector.load %arg6[%c120, %c0_18] : memref<128x1024xf32, #tpu.memory_space<vmem>>, vector<8x1024xf32>
    tpu.vector_store %arg6[%c120, %c0_18], %0 {strides = array<i32>} : memref<128x1024xf32, #tpu.memory_space<vmem>>, vector<8x1024xf32>,
    %c0_19 = arith.constant 0 : index
    %c0_20 = arith.constant 0 : index
    %65 = vector.load %arg4[%c0_19, %c0_20] : memref<8x128xf32, #tpu.memory_space<vmem>>, vector<8x128xf32>
    %c0_21 = arith.constant 0 : index
    %c0_22 = arith.constant 0 : index
    %66 = vector.load %arg6[%c0_21, %c0_22] : memref<128x1024xf32, #tpu.memory_space<vmem>>, vector<128x1024xf32>
    %cst_23 = arith.constant dense<0.000000e+00> : vector<8x1024xf32>
    %67 = tpu.matmul %65, %66, %cst_23 {dimension_numbers = #tpu.dot_dimension_numbers<[1], [0], [0], [1], [0, 0, 1, 1], [], []>} : vector<8x128xf32>, vector<128x1024xf32>, vector<8x1024xf32> -> vector<8x1024xf32>
    %c0_24 = arith.constant 0 : index
    %c0_25 = arith.constant 0 : index
    %68 = vector.load %arg5[%c0_24, %c0_25] : memref<8x1024xf32, #tpu.memory_space<vmem>>, vector<8x1024xf32>
    tpu.vector_store %arg5[%c0_24, %c0_25], %67 {strides = array<i32>} : memref<8x1024xf32, #tpu.memory_space<vmem>>, vector<8x1024xf32>,
    return
  }
  func.func @transform_0(%arg0: i32, %arg1: i32) -> (i32, i32) {
    %c0_i32 = arith.constant 0 : i32
    return %arg0, %arg1 : i32, i32
  }
  func.func @transform_1(%arg0: i32, %arg1: i32) -> (i32, i32) {
    %c8_i32 = arith.constant 8 : i32
    %0 = arith.muli %arg1, %c8_i32 : i32
    %c1_i32 = arith.constant 1 : i32
    %1 = arith.subi %0, %c1_i32 : i32
    %c0_i32 = arith.constant 0 : i32
    %2 = arith.maxsi %1, %c0_i32 : i32
    %c0_i32_0 = arith.constant 0 : i32
    return %arg0, %2 : i32, i32
  }
  func.func @transform_2(%arg0: i32, %arg1: i32) -> (i32, i32) {
    %c0_i32 = arith.constant 0 : i32
    %c0_i32_0 = arith.constant 0 : i32
    %c0_i32_1 = arith.constant 0 : i32
    return %c0_i32, %c0_i32_0 : i32, i32
  }
  func.func @transform_3(%arg0: i32, %arg1: i32) -> (i32, i32) {
    %c0_i32 = arith.constant 0 : i32
    return %arg0, %arg1 : i32, i32
  }
}

</mosaic_0001>

<llo_original>
// kernel: tpu_custom_call.1
$region0: #{tpu_custom_call.1}
  #allocation0 [shape = 'u32[]', space=smem, size = 0x4, offset = 0x4, fixed_abs, tag = 'smem constant byte address 0x4 - core index']
  #allocation1 [shape = 'u32[144,128]{1,0:T(1,128)}', space=vmem, size = 0x12000, scoped, tag = 'internal scratch']
  #allocation2 [shape = 'f32[128,1024]{1,0:T(8,128)}', space=vmem, size = 0x80000, scoped, tag = 'scratch operand']
  %s0 = inlined_call_operand.hbm [shape: f32[16,2048], index: 0, kind: input, shape index: {}]
  %s1 = inlined_call_operand.hbm [shape: f32[16,2048], index: 1, kind: input, shape index: {}]
  %s2 = inlined_call_operand.hbm [shape: f32[8,128], index: 2, kind: input, shape index: {}]
  %s3 = inlined_call_operand.hbm [shape: f32[16,2048], index: 3, kind: output, shape index: {}]
  %s4 = sld [smem:[#allocation0]]
  $region57: #{tpu_custom_call.1} parent=0
    _
  %s6 = ssub.s32 1, %s4
  %s7 = scalar_select 0, %s6, %s4
  $region1: #{tpu_custom_call.1} parent=0
    #allocation3 [shape = 'u8[65536]{0}', space=vmem, size = 0x10000, scoped, tag = 'input window, operand 0']
    #allocation4 [shape = 's32[2]{0}', space=sflag, size = 0x8, scoped, tag = 'scoped memory for tpu_custom_call.1']
    #allocation5 [shape = 's32[2]{0}', space=sflag, size = 0x8, scoped, tag = 'scoped memory for tpu_custom_call.1']
    #allocation6 [shape = 'u8[8192]{0}', space=vmem, size = 0x2000, scoped, tag = 'input window, operand 1']
    #allocation7 [shape = 's32[2]{0}', space=sflag, size = 0x8, scoped, tag = 'scoped memory for tpu_custom_call.1']
    #allocation8 [shape = 'u8[4096]{0}', space=vmem, size = 0x1000, scoped, tag = 'input window, operand 2, single buffered']
    #allocation9 [shape = 'u8[65536]{0}', space=vmem, size = 0x10000, scoped, tag = 'output window, operand 0']
    %8 = vsyncpa [#allocation4], 0
    %s9 = scalar_lea.sflag [#allocation4], 1
    %10 = vsyncpa %s9, 0
    %11 = vsyncpa [#allocation7], 0
    %s12 = scalar_lea.sflag [#allocation7], 1
    %13 = vsyncpa %s12, 0
    %14 = vsyncpa [#allocation5], 0
    %s15 = scalar_lea.sflag [#allocation5], 1
    %16 = vsyncpa %s15, 0
    loop: start=0, step=1, limit=6
    $region2: #{tpu_custom_call.1} parent=1 // loop_pre_header
      _
    $region3: #{tpu_custom_call.1} parent=1 // loop_header
      %s18 = sphi 0, %s22
      %p19 = scmp.ge.s32.totalorder %s18, 6
      %s25 = sphi 0, %s37
      %s26 = sphi 0, %s33
      %s27 = sphi 0, %s25
      %s28 = sphi 0, %s26
      %s29 = sphi 0, %s27
      %s30 = sphi 0, %s28
      %s42 = sphi 0, %s44
      %s45 = sphi 0, %s42
      %s46 = sphi 0, %s45
      %s62 = sphi 0, %s46
      %s78 = sphi 0, %s80
      %s81 = sphi 0, %s78
      %s82 = sphi 0, %s81
      %s98 = sphi 0, %s82
      %s102 = sphi 0, %s102
      %s104 = sphi 0, %s102
      %s105 = sphi 0, %s104
      %s119 = sphi 0, %s105
      %s127 = sphi 0, %s129
      %s130 = sphi 0, %s127
      %s131 = sphi 0, %s130
      %s147 = sphi 0, %s131
    $region4: #{tpu_custom_call.1} parent=1 // loop_header_branch
      %21 = sbr.rel (%p19) target = $region8
    $region5: #{tpu_custom_call.1} parent=1 // loop_body
      %s23 = ssub.s32 %s18, 1
      %s24 = ssub.s32 %s18, 2
      %s31 = sadd.s32 1, %s26
      %p32 = scmp.ge.s32.totalorder %s31, 2
      %s33 = scalar_select %p32, 0, %s31
      %s34 = sadd.s32 1, %s25
      %s35 = scalar_select %p32, %s34, %s25
      %p36 = scmp.ge.s32.totalorder %s35, 2
      %s37 = scalar_select %p36, 0, %s35
      %s38 = ssub.s32 %s25, %s37
      %s39 = ssub.s32 %s26, %s33
      %s40 = sor.u32 %s38, %s39
      %p41 = scmp.eq.s32.totalorder %s40, 0
      %s43 = sadd.s32 %s42, 1
      %s44 = scalar_select %p41, %s42, %s43
      %p47 = pneg %p41
      %p48 = scmp.eq.s32.totalorder %s18, 3
      %p49 = por %p47, %p48
      %p50 = scmp.ne.s32.totalorder %s42, %s45
      %p51 = scmp.eq.s32.totalorder %s18, 0
      %p52 = por %p50, %p51
      %p53 = scmp.ne.s32.totalorder %s42, %s45
      %p54 = scmp.eq.s32.totalorder %s23, 3
      %p55 = por %p53, %p54
      %p56 = scmp.ne.s32.totalorder %s45, %s46
      %p57 = scmp.eq.s32.totalorder %s23, 0
      %p58 = por %p56, %p57
      %p59 = scmp.ne.s32.totalorder %s45, %s46
      %p60 = scmp.eq.s32.totalorder %s24, 3
      %p61 = por %p59, %p60
      %p63 = scmp.ne.s32.totalorder %s46, %s62
      %p64 = scmp.eq.s32.totalorder %s24, 0
      %p65 = por %p63, %p64
      %s66 = smul.u32 %s26, 8
      %s67 = ssub.s32 %s66, 1
      %p68 = scmp.gt.s32.totalorder %s67, 0
      %s69 = scalar_select %p68, %s67, 0
      %s70 = smul.u32 %s33, 8
      %s71 = ssub.s32 %s70, 1
      %p72 = scmp.gt.s32.totalorder %s71, 0
      %s73 = scalar_select %p72, %s71, 0
      %s74 = ssub.s32 %s25, %s37
      %s75 = ssub.s32 %s69, %s73
      %s76 = sor.u32 %s74, %s75
      %p77 = scmp.eq.s32.totalorder %s76, 0
      %s79 = sadd.s32 %s78, 1
      %s80 = scalar_select %p77, %s78, %s79
      %p83 = pneg %p77
      %p84 = scmp.eq.s32.totalorder %s18, 3
      %p85 = por %p83, %p84
      %p86 = scmp.ne.s32.totalorder %s78, %s81
      %p87 = scmp.eq.s32.totalorder %s18, 0
      %p88 = por %p86, %p87
      %p89 = scmp.ne.s32.totalorder %s78, %s81
      %p90 = scmp.eq.s32.totalorder %s23, 3
      %p91 = por %p89, %p90
      %p92 = scmp.ne.s32.totalorder %s81, %s82
      %p93 = scmp.eq.s32.totalorder %s23, 0
      %p94 = por %p92, %p93
      %p95 = scmp.ne.s32.totalorder %s81, %s82
      %p96 = scmp.eq.s32.totalorder %s24, 3
      %p97 = por %p95, %p96
      %p99 = scmp.ne.s32.totalorder %s82, %s98
      %p100 = scmp.eq.s32.totalorder %s24, 0
      %p101 = por %p99, %p100
      %s103 = sadd.s32 %s102, 1
      %p106 = scmp.eq.s32.totalorder %s18, 3
      %p107 = scmp.ne.s32.totalorder %s102, %s104
      %p108 = scmp.eq.s32.totalorder %s18, 0
      %p109 = por %p107, %p108
      %p110 = scmp.ne.s32.totalorder %s102, %s104
      %p111 = scmp.eq.s32.totalorder %s23, 3
      %p112 = por %p110, %p111
      %p113 = scmp.ne.s32.totalorder %s104, %s105
      %p114 = scmp.eq.s32.totalorder %s23, 0
      %p115 = por %p113, %p114
      %p116 = scmp.ne.s32.totalorder %s104, %s105
      %p117 = scmp.eq.s32.totalorder %s24, 3
      %p118 = por %p116, %p117
      %p120 = scmp.ne.s32.totalorder %s105, %s119
      %p121 = scmp.eq.s32.totalorder %s24, 0
      %p122 = por %p120, %p121
      %s123 = ssub.s32 %s25, %s37
      %s124 = ssub.s32 %s26, %s33
      %s125 = sor.u32 %s123, %s124
      %p126 = scmp.eq.s32.totalorder %s125, 0
      %s128 = sadd.s32 %s127, 1
      %s129 = scalar_select %p126, %s127, %s128
      %p132 = pneg %p126
      %p133 = scmp.eq.s32.totalorder %s18, 3
      %p134 = por %p132, %p133
      %p135 = scmp.ne.s32.totalorder %s127, %s130
      %p136 = scmp.eq.s32.totalorder %s18, 0
      %p137 = por %p135, %p136
      %p138 = scmp.ne.s32.totalorder %s127, %s130
      %p139 = scmp.eq.s32.totalorder %s23, 3
      %p140 = por %p138, %p139
      %p141 = scmp.ne.s32.totalorder %s130, %s131
      %p142 = scmp.eq.s32.totalorder %s23, 0
      %p143 = por %p141, %p142
      %p144 = scmp.ne.s32.totalorder %s130, %s131
      %p145 = scmp.eq.s32.totalorder %s24, 3
      %p146 = por %p144, %p145
      %p148 = scmp.ne.s32.totalorder %s131, %s147
      %p149 = scmp.eq.s32.totalorder %s24, 0
      %p150 = por %p148, %p149
      %p151 = scmp.le.s32.totalorder 1, %s18
      %p152 = scmp.lt.s32.totalorder %s18, 5
      %p153 = pnand %p151, %p152
      %p154 = pneg %p153
      // Predicated region
      $region9: #{tpu_custom_call.1} parent=5 // pred_check
        _
      $region10: #{tpu_custom_call.1} parent=5 // pred_check_branch
        %156 = sbr.rel (%p153) target = $region12
      $region11: #{tpu_custom_call.1} parent=5 // pred_region
        %s157 = ssub.s32 %s18, 1
        // Predicated region
        $region13: #{tpu_custom_call.1} parent=11 // pred_check
          %p158 = pneg %p115
        $region14: #{tpu_custom_call.1} parent=11 // pred_check_branch
          %160 = sbr.rel (%p158) target = $region16
        $region15: #{tpu_custom_call.1} parent=11 // pred_region
          %s162 = ssub.s32 128, 128
          %163 = vsyncadd [#allocation7], %s162
          %s165 = sshll.u32 [#allocation8], 4
          %s166 = int_to_ptr.vmem [resolvable:$true] %s165
          %168 = dma.hbm_to_vmem [thread:$0]  %s2, 128, %s166, [#allocation7]
        $region16: #{tpu_custom_call.1} parent=11 // pred_fallthru
          _
      $region12: #{tpu_custom_call.1} parent=5 // pred_fallthru
        _
      %p169 = scmp.lt.s32.totalorder %s18, 4
      // Predicated region
      $region17: #{tpu_custom_call.1} parent=5 // pred_check
        %p170 = pneg %p169
      $region18: #{tpu_custom_call.1} parent=5 // pred_check_branch
        %172 = sbr.rel (%p170) target = $region20
      $region19: #{tpu_custom_call.1} parent=5 // pred_region
        // Predicated region
        $region21: #{tpu_custom_call.1} parent=19 // pred_check
          %p173 = pneg %p52
        $region22: #{tpu_custom_call.1} parent=19 // pred_check_branch
          %175 = sbr.rel (%p173) target = $region24
        $region23: #{tpu_custom_call.1} parent=19 // pred_region
          %s176 = sand.u32 %s42, 1
          %s177 = scalar_lea.sflag [#allocation4], %s176
          %s178 = sand.u32 %s42, 1
          %s179 = smul.addr %s178, 64
          %s180 = scalar_lea.vmem [#allocation3], %s179
          %s181 = smul.u32 8, %s26
          %s183 = ssub.s32 1024, 1024
          %184 = vsyncadd %s177, %s183
          %s185 = smul.addr %s25, 16
          %s186 = sadd.s32 %s181, %s185
          %s187 = smul.addr %s186, 128
          %s188 = scalar_lea.hbm %s0, %s187
          %s190 = sshll.u32 %s180, 4
          %s191 = int_to_ptr.vmem [resolvable:$true] %s190
          %193 = dma.hbm_to_vmem [thread:$0]  %s188, 1024, %s191, %s177
        $region24: #{tpu_custom_call.1} parent=19 // pred_fallthru
          _
        // Predicated region
        $region25: #{tpu_custom_call.1} parent=19 // pred_check
          %p194 = pneg %p88
        $region26: #{tpu_custom_call.1} parent=19 // pred_check_branch
          %196 = sbr.rel (%p194) target = $region28
        $region27: #{tpu_custom_call.1} parent=19 // pred_region
          %s197 = sand.u32 %s18, 1
          %s198 = scalar_lea.sflag [#allocation7], %s197
          %s199 = sand.u32 %s78, 1
          %s200 = smul.addr %s199, 8
          %s201 = scalar_lea.vmem [#allocation6], %s200
          %s202 = smul.u32 %s26, 8
          %s203 = ssub.s32 %s202, 1
          %p204 = scmp.gt.s32.totalorder %s203, 0
          %s205 = scalar_select %p204, %s203, 0
          %s207 = ssub.s32 128, 128
          %208 = vsyncadd %s198, %s207
          %s209 = smul.addr %s25, 16
          %s210 = sadd.s32 %s205, %s209
          %s211 = smul.addr %s210, 128
          %s212 = scalar_lea.hbm %s1, %s211
          %s214 = sshll.u32 %s201, 4
          %s215 = int_to_ptr.vmem [resolvable:$true] %s214
          %217 = dma.hbm_to_vmem [thread:$0]  %s212, 128, %s215, %s198
        $region28: #{tpu_custom_call.1} parent=19 // pred_fallthru
          _
      $region20: #{tpu_custom_call.1} parent=5 // pred_fallthru
        _
      %p218 = scmp.le.s32.totalorder 1, %s18
      %p219 = scmp.lt.s32.totalorder %s18, 5
      %p220 = pnand %p218, %p219
      %p221 = pneg %p220
      // Predicated region
      $region29: #{tpu_custom_call.1} parent=5 // pred_check
        _
      $region30: #{tpu_custom_call.1} parent=5 // pred_check_branch
        %223 = sbr.rel (%p220) target = $region32
      $region31: #{tpu_custom_call.1} parent=5 // pred_region
        %s224 = ssub.s32 %s18, 1
        %s225 = sand.u32 %s45, 1
        %s226 = scalar_lea.sflag [#allocation4], %s225
        %s227 = sand.u32 %s45, 1
        %s228 = smul.addr %s227, 64
        %s229 = scalar_lea.vmem [#allocation3], %s228
        // Predicated region
        $region33: #{tpu_custom_call.1} parent=31 // pred_check
          %p230 = pneg %p58
        $region34: #{tpu_custom_call.1} parent=31 // pred_check_branch
          %232 = sbr.rel (%p230) target = $region36
        $region35: #{tpu_custom_call.1} parent=31 // pred_region
          %233 = dma.done %s226, 1024
        $region36: #{tpu_custom_call.1} parent=31 // pred_fallthru
          _
        %s234 = sand.u32 %s23, 1
        %s235 = scalar_lea.sflag [#allocation7], %s234
        %s236 = sand.u32 %s81, 1
        %s237 = smul.addr %s236, 8
        %s238 = scalar_lea.vmem [#allocation6], %s237
        // Predicated region
        $region37: #{tpu_custom_call.1} parent=31 // pred_check
          %p239 = pneg %p94
        $region38: #{tpu_custom_call.1} parent=31 // pred_check_branch
          %241 = sbr.rel (%p239) target = $region40
        $region39: #{tpu_custom_call.1} parent=31 // pred_region
          %242 = dma.done %s235, 128
        $region40: #{tpu_custom_call.1} parent=31 // pred_fallthru
          _
        // Predicated region
        $region41: #{tpu_custom_call.1} parent=31 // pred_check
          %p243 = pneg %p115
        $region42: #{tpu_custom_call.1} parent=31 // pred_check_branch
          %245 = sbr.rel (%p243) target = $region44
        $region43: #{tpu_custom_call.1} parent=31 // pred_region
          %246 = dma.done [#allocation7], 128
        $region44: #{tpu_custom_call.1} parent=31 // pred_fallthru
          _
        %s247 = sand.u32 %s45, 1
        %s248 = scalar_lea.sflag [#allocation4], %s247
        %s249 = sand.u32 %s45, 1
        %s250 = smul.addr %s249, 64
        %s251 = scalar_lea.vmem [#allocation3], %s250
        %p252 = pneg %p58
        %p253 = pneg %p55
        %s254 = sand.u32 %s23, 1
        %s255 = scalar_lea.sflag [#allocation7], %s254
        %s256 = sand.u32 %s81, 1
        %s257 = smul.addr %s256, 8
        %s258 = scalar_lea.vmem [#allocation6], %s257
        %p259 = pneg %p94
        %p260 = pneg %p91
        %p261 = pneg %p115
        %p262 = pneg %p112
        %p263 = pneg %p143
        %p264 = pneg %p140
        %s265 = sand.u32 %s130, 1
        %s266 = scalar_lea.sflag [#allocation5], %s265
        %s267 = sand.u32 %s130, 1
        %s268 = smul.addr %s267, 64
        %s269 = scalar_lea.vmem [#allocation9], %s268
        %s270 = smul.u32 8, %s28
        %s271 = smul.u32 %s28, 8
        %s272 = ssub.s32 %s271, 1
        %p273 = scmp.gt.s32.totalorder %s272, 0
        %s274 = scalar_select %p273, %s272, 0
        %s275 = smul.u32 8, %s28
        %v276 = vld [vmem:[%s229] sm:$0xff]
        %v277 = vld [vmem:[%s229 + $0x8] sm:$0xff]
        %v278 = vld [vmem:[%s229 + $0x10] sm:$0xff]
        %v279 = vld [vmem:[%s229 + $0x18] sm:$0xff]
        %v280 = vld [vmem:[%s229 + $0x20] sm:$0xff]
        %v281 = vld [vmem:[%s229 + $0x28] sm:$0xff]
        %v282 = vld [vmem:[%s229 + $0x30] sm:$0xff]
        %v283 = vld [vmem:[%s229 + $0x38] sm:$0xff]
        %v284 = vld [vmem:[%s238] sm:$0xff]
        %p285 = scmp.gt.s32.totalorder %s28, 0
        %s286 = scalar_select %p285, 1, 0
        %v287 = vstv %s286
        %vm288 = vcmp.eq.s32.totalorder %v287, 1
        %v289 = vsel %vm288, %v284, 0.0
        %291 = vrot.lane.b32.xlu0 %v289, 15
        %v292 = vpop.permute.xlu0 %291
        %302 = vrot.lane.b32.xlu0 %v276, 15
        %v303 = vpop.permute.xlu0 %302
        %304 = vrot.lane.b32.xlu0 %v277, 15
        %v305 = vpop.permute.xlu0 %304
        %306 = vrot.lane.b32.xlu0 %v278, 15
        %v307 = vpop.permute.xlu0 %306
        %308 = vrot.lane.b32.xlu0 %v279, 15
        %v309 = vpop.permute.xlu0 %308
        %310 = vrot.lane.b32.xlu0 %v280, 15
        %v311 = vpop.permute.xlu0 %310
        %312 = vrot.lane.b32.xlu0 %v281, 15
        %v313 = vpop.permute.xlu0 %312
        %314 = vrot.lane.b32.xlu0 %v282, 15
        %v315 = vpop.permute.xlu0 %314
        %316 = vrot.lane.b32.xlu0 %v283, 15
        %v317 = vpop.permute.xlu0 %316
        %vm318 = vcmask 121856
        %v319 = vsel %vm318, %v303, %v305
        %v320 = vsel %vm318, %v305, %v307
        %v321 = vsel %vm318, %v307, %v309
        %v322 = vsel %vm318, %v309, %v311
        %v323 = vsel %vm318, %v311, %v313
        %v324 = vsel %vm318, %v313, %v315
        %v325 = vsel %vm318, %v315, %v317
        %v334 = vsel %vm318, %v292, %v303
        %335 = vst [vmem:[#allocation2] sm:$0xff] %v334
        %336 = vst [vmem:[#allocation2 + $0x8] sm:$0xff] %v319
        %337 = vst [vmem:[#allocation2 + $0x10] sm:$0xff] %v320
        %338 = vst [vmem:[#allocation2 + $0x18] sm:$0xff] %v321
        %339 = vst [vmem:[#allocation2 + $0x20] sm:$0xff] %v322
        %340 = vst [vmem:[#allocation2 + $0x28] sm:$0xff] %v323
        %341 = vst [vmem:[#allocation2 + $0x30] sm:$0xff] %v324
        %342 = vst [vmem:[#allocation2 + $0x38] sm:$0xff] %v325
        %343 = vrot.lane.b32.xlu0 %v289, 14
        %v344 = vpop.permute.xlu0 %343
        %346 = vrot.lane.b32.xlu0 %v276, 14
        %v347 = vpop.permute.xlu0 %346
        %348 = vrot.lane.b32.xlu0 %v277, 14
        %v349 = vpop.permute.xlu0 %348
        %350 = vrot.lane.b32.xlu0 %v278, 14
        %v351 = vpop.permute.xlu0 %350
        %352 = vrot.lane.b32.xlu0 %v279, 14
        %v353 = vpop.permute.xlu0 %352
        %354 = vrot.lane.b32.xlu0 %v280, 14
        %v355 = vpop.permute.xlu0 %354
        %356 = vrot.lane.b32.xlu0 %v281, 14
        %v357 = vpop.permute.xlu0 %356
        %358 = vrot.lane.b32.xlu0 %v282, 14
        %v359 = vpop.permute.xlu0 %358
        %360 = vrot.lane.b32.xlu0 %v283, 14
        %v361 = vpop.permute.xlu0 %360
        %vm362 = vcmask 113664
        %v363 = vsel %vm362, %v347, %v349
        %v364 = vsel %vm362, %v349, %v351
        %v365 = vsel %vm362, %v351, %v353
        %v366 = vsel %vm362, %v353, %v355
        %v367 = vsel %vm362, %v355, %v357
        %v368 = vsel %vm362, %v357, %v359
        %v369 = vsel %vm362, %v359, %v361
        %v378 = vsel %vm362, %v344, %v347
        %379 = vst [vmem:[#allocation2 + $0x40] sm:$0xff] %v378
        %380 = vst [vmem:[#allocation2 + $0x48] sm:$0xff] %v363
        %381 = vst [vmem:[#allocation2 + $0x50] sm:$0xff] %v364
        %382 = vst [vmem:[#allocation2 + $0x58] sm:$0xff] %v365
        %383 = vst [vmem:[#allocation2 + $0x60] sm:$0xff] %v366
        %384 = vst [vmem:[#allocation2 + $0x68] sm:$0xff] %v367
        %385 = vst [vmem:[#allocation2 + $0x70] sm:$0xff] %v368
        %386 = vst [vmem:[#allocation2 + $0x78] sm:$0xff] %v369
        %387 = vrot.lane.b32.xlu0 %v289, 13
        %v388 = vpop.permute.xlu0 %387
        %390 = vrot.lane.b32.xlu0 %v276, 13
        %v391 = vpop.permute.xlu0 %390
        %392 = vrot.lane.b32.xlu0 %v277, 13
        %v393 = vpop.permute.xlu0 %392
        %394 = vrot.lane.b32.xlu0 %v278, 13
        %v395 = vpop.permute.xlu0 %394
        %396 = vrot.lane.b32.xlu0 %v279, 13
        %v397 = vpop.permute.xlu0 %396
        %398 = vrot.lane.b32.xlu0 %v280, 13
        %v399 = vpop.permute.xlu0 %398
        %400 = vrot.lane.b32.xlu0 %v281, 13
        %v401 = vpop.permute.xlu0 %400
        %402 = vrot.lane.b32.xlu0 %v282, 13
        %v403 = vpop.permute.xlu0 %402
        %404 = vrot.lane.b32.xlu0 %v283, 13
        %v405 = vpop.permute.xlu0 %404
        %vm406 = vcmask 105472
        %v407 = vsel %vm406, %v391, %v393
        %v408 = vsel %vm406, %v393, %v395
        %v409 = vsel %vm406, %v395, %v397
        %v410 = vsel %vm406, %v397, %v399
        %v411 = vsel %vm406, %v399, %v401
        %v412 = vsel %vm406, %v401, %v403
        %v413 = vsel %vm406, %v403, %v405
        %v422 = vsel %vm406, %v388, %v391
        %423 = vst [vmem:[#allocation2 + $0x80] sm:$0xff] %v422
        %424 = vst [vmem:[#allocation2 + $0x88] sm:$0xff] %v407
        %425 = vst [vmem:[#allocation2 + $0x90] sm:$0xff] %v408
        %426 = vst [vmem:[#allocation2 + $0x98] sm:$0xff] %v409
        %427 = vst [vmem:[#allocation2 + $0xa0] sm:$0xff] %v410
        %428 = vst [vmem:[#allocation2 + $0xa8] sm:$0xff] %v411
        %429 = vst [vmem:[#allocation2 + $0xb0] sm:$0xff] %v412
        %430 = vst [vmem:[#allocation2 + $0xb8] sm:$0xff] %v413
        %431 = vrot.lane.b32.xlu0 %v289, 12
        %v432 = vpop.permute.xlu0 %431
        %434 = vrot.lane.b32.xlu0 %v276, 12
        %v435 = vpop.permute.xlu0 %434
        %436 = vrot.lane.b32.xlu0 %v277, 12
        %v437 = vpop.permute.xlu0 %436
        %438 = vrot.lane.b32.xlu0 %v278, 12
        %v439 = vpop.permute.xlu0 %438
        %440 = vrot.lane.b32.xlu0 %v279, 12
        %v441 = vpop.permute.xlu0 %440
        %442 = vrot.lane.b32.xlu0 %v280, 12
        %v443 = vpop.permute.xlu0 %442
        %444 = vrot.lane.b32.xlu0 %v281, 12
        %v445 = vpop.permute.xlu0 %444
        %446 = vrot.lane.b32.xlu0 %v282, 12
        %v447 = vpop.permute.xlu0 %446
        %448 = vrot.lane.b32.xlu0 %v283, 12
        %v449 = vpop.permute.xlu0 %448
        %vm450 = vcmask 97280
        %v451 = vsel %vm450, %v435, %v437
        %v452 = vsel %vm450, %v437, %v439
        %v453 = vsel %vm450, %v439, %v441
        %v454 = vsel %vm450, %v441, %v443
        %v455 = vsel %vm450, %v443, %v445
        %v456 = vsel %vm450, %v445, %v447
        %v457 = vsel %vm450, %v447, %v449
        %v466 = vsel %vm450, %v432, %v435
        %467 = vst [vmem:[#allocation2 + $0xc0] sm:$0xff] %v466
        %468 = vst [vmem:[#allocation2 + $0xc8] sm:$0xff] %v451
        %469 = vst [vmem:[#allocation2 + $0xd0] sm:$0xff] %v452
        %470 = vst [vmem:[#allocation2 + $0xd8] sm:$0xff] %v453
        %471 = vst [vmem:[#allocation2 + $0xe0] sm:$0xff] %v454
        %472 = vst [vmem:[#allocation2 + $0xe8] sm:$0xff] %v455
        %473 = vst [vmem:[#allocation2 + $0xf0] sm:$0xff] %v456
        %474 = vst [vmem:[#allocation2 + $0xf8] sm:$0xff] %v457
        %475 = vrot.lane.b32.xlu0 %v289, 11
        %v476 = vpop.permute.xlu0 %475
        %478 = vrot.lane.b32.xlu0 %v276, 11
        %v479 = vpop.permute.xlu0 %478
        %480 = vrot.lane.b32.xlu0 %v277, 11
        %v481 = vpop.permute.xlu0 %480
        %482 = vrot.lane.b32.xlu0 %v278, 11
        %v483 = vpop.permute.xlu0 %482
        %484 = vrot.lane.b32.xlu0 %v279, 11
        %v485 = vpop.permute.xlu0 %484
        %486 = vrot.lane.b32.xlu0 %v280, 11
        %v487 = vpop.permute.xlu0 %486
        %488 = vrot.lane.b32.xlu0 %v281, 11
        %v489 = vpop.permute.xlu0 %488
        %490 = vrot.lane.b32.xlu0 %v282, 11
        %v491 = vpop.permute.xlu0 %490
        %492 = vrot.lane.b32.xlu0 %v283, 11
        %v493 = vpop.permute.xlu0 %492
        %vm494 = vcmask 89088
        %v495 = vsel %vm494, %v479, %v481
        %v496 = vsel %vm494, %v481, %v483
        %v497 = vsel %vm494, %v483, %v485
        %v498 = vsel %vm494, %v485, %v487
        %v499 = vsel %vm494, %v487, %v489
        %v500 = vsel %vm494, %v489, %v491
        %v501 = vsel %vm494, %v491, %v493
        %v510 = vsel %vm494, %v476, %v479
        %511 = vst [vmem:[#allocation2 + $0x100] sm:$0xff] %v510
        %512 = vst [vmem:[#allocation2 + $0x108] sm:$0xff] %v495
        %513 = vst [vmem:[#allocation2 + $0x110] sm:$0xff] %v496
        %514 = vst [vmem:[#allocation2 + $0x118] sm:$0xff] %v497
        %515 = vst [vmem:[#allocation2 + $0x120] sm:$0xff] %v498
        %516 = vst [vmem:[#allocation2 + $0x128] sm:$0xff] %v499
        %517 = vst [vmem:[#allocation2 + $0x130] sm:$0xff] %v500
        %518 = vst [vmem:[#allocation2 + $0x138] sm:$0xff] %v501
        %519 = vrot.lane.b32.xlu0 %v289, 10
        %v520 = vpop.permute.xlu0 %519
        %522 = vrot.lane.b32.xlu0 %v276, 10
        %v523 = vpop.permute.xlu0 %522
        %524 = vrot.lane.b32.xlu0 %v277, 10
        %v525 = vpop.permute.xlu0 %524
        %526 = vrot.lane.b32.xlu0 %v278, 10
        %v527 = vpop.permute.xlu0 %526
        %528 = vrot.lane.b32.xlu0 %v279, 10
        %v529 = vpop.permute.xlu0 %528
        %530 = vrot.lane.b32.xlu0 %v280, 10
        %v531 = vpop.permute.xlu0 %530
        %532 = vrot.lane.b32.xlu0 %v281, 10
        %v533 = vpop.permute.xlu0 %532
        %534 = vrot.lane.b32.xlu0 %v282, 10
        %v535 = vpop.permute.xlu0 %534
        %536 = vrot.lane.b32.xlu0 %v283, 10
        %v537 = vpop.permute.xlu0 %536
        %vm538 = vcmask 80896
        %v539 = vsel %vm538, %v523, %v525
        %v540 = vsel %vm538, %v525, %v527
        %v541 = vsel %vm538, %v527, %v529
        %v542 = vsel %vm538, %v529, %v531
        %v543 = vsel %vm538, %v531, %v533
        %v544 = vsel %vm538, %v533, %v535
        %v545 = vsel %vm538, %v535, %v537
        %v554 = vsel %vm538, %v520, %v523
        %555 = vst [vmem:[#allocation2 + $0x140] sm:$0xff] %v554
        %556 = vst [vmem:[#allocation2 + $0x148] sm:$0xff] %v539
        %557 = vst [vmem:[#allocation2 + $0x150] sm:$0xff] %v540
        %558 = vst [vmem:[#allocation2 + $0x158] sm:$0xff] %v541
        %559 = vst [vmem:[#allocation2 + $0x160] sm:$0xff] %v542
        %560 = vst [vmem:[#allocation2 + $0x168] sm:$0xff] %v543
        %561 = vst [vmem:[#allocation2 + $0x170] sm:$0xff] %v544
        %562 = vst [vmem:[#allocation2 + $0x178] sm:$0xff] %v545
        %563 = vrot.lane.b32.xlu0 %v289, 9
        %v564 = vpop.permute.xlu0 %563
        %566 = vrot.lane.b32.xlu0 %v276, 9
        %v567 = vpop.permute.xlu0 %566
        %568 = vrot.lane.b32.xlu0 %v277, 9
        %v569 = vpop.permute.xlu0 %568
        %570 = vrot.lane.b32.xlu0 %v278, 9
        %v571 = vpop.permute.xlu0 %570
        %572 = vrot.lane.b32.xlu0 %v279, 9
        %v573 = vpop.permute.xlu0 %572
        %574 = vrot.lane.b32.xlu0 %v280, 9
        %v575 = vpop.permute.xlu0 %574
        %576 = vrot.lane.b32.xlu0 %v281, 9
        %v577 = vpop.permute.xlu0 %576
        %578 = vrot.lane.b32.xlu0 %v282, 9
        %v579 = vpop.permute.xlu0 %578
        %580 = vrot.lane.b32.xlu0 %v283, 9
        %v581 = vpop.permute.xlu0 %580
        %vm582 = vcmask 72704
        %v583 = vsel %vm582, %v567, %v569
        %v584 = vsel %vm582, %v569, %v571
        %v585 = vsel %vm582, %v571, %v573
        %v586 = vsel %vm582, %v573, %v575
        %v587 = vsel %vm582, %v575, %v577
        %v588 = vsel %vm582, %v577, %v579
        %v589 = vsel %vm582, %v579, %v581
        %v598 = vsel %vm582, %v564, %v567
        %599 = vst [vmem:[#allocation2 + $0x180] sm:$0xff] %v598
        %600 = vst [vmem:[#allocation2 + $0x188] sm:$0xff] %v583
        %601 = vst [vmem:[#allocation2 + $0x190] sm:$0xff] %v584
        %602 = vst [vmem:[#allocation2 + $0x198] sm:$0xff] %v585
        %603 = vst [vmem:[#allocation2 + $0x1a0] sm:$0xff] %v586
        %604 = vst [vmem:[#allocation2 + $0x1a8] sm:$0xff] %v587
        %605 = vst [vmem:[#allocation2 + $0x1b0] sm:$0xff] %v588
        %606 = vst [vmem:[#allocation2 + $0x1b8] sm:$0xff] %v589
        %607 = vrot.lane.b32.xlu0 %v289, 8
        %v608 = vpop.permute.xlu0 %607
        %610 = vrot.lane.b32.xlu0 %v276, 8
        %v611 = vpop.permute.xlu0 %610
        %612 = vrot.lane.b32.xlu0 %v277, 8
        %v613 = vpop.permute.xlu0 %612
        %614 = vrot.lane.b32.xlu0 %v278, 8
        %v615 = vpop.permute.xlu0 %614
        %616 = vrot.lane.b32.xlu0 %v279, 8
        %v617 = vpop.permute.xlu0 %616
        %618 = vrot.lane.b32.xlu0 %v280, 8
        %v619 = vpop.permute.xlu0 %618
        %620 = vrot.lane.b32.xlu0 %v281, 8
        %v621 = vpop.permute.xlu0 %620
        %622 = vrot.lane.b32.xlu0 %v282, 8
        %v623 = vpop.permute.xlu0 %622
        %624 = vrot.lane.b32.xlu0 %v283, 8
        %v625 = vpop.permute.xlu0 %624
        %vm626 = vcmask 64512
        %v627 = vsel %vm626, %v611, %v613
        %v628 = vsel %vm626, %v613, %v615
        %v629 = vsel %vm626, %v615, %v617
        %v630 = vsel %vm626, %v617, %v619
        %v631 = vsel %vm626, %v619, %v621
        %v632 = vsel %vm626, %v621, %v623
        %v633 = vsel %vm626, %v623, %v625
        %v642 = vsel %vm626, %v608, %v611
        %643 = vst [vmem:[#allocation2 + $0x1c0] sm:$0xff] %v642
        %644 = vst [vmem:[#allocation2 + $0x1c8] sm:$0xff] %v627
        %645 = vst [vmem:[#allocation2 + $0x1d0] sm:$0xff] %v628
        %646 = vst [vmem:[#allocation2 + $0x1d8] sm:$0xff] %v629
        %647 = vst [vmem:[#allocation2 + $0x1e0] sm:$0xff] %v630
        %648 = vst [vmem:[#allocation2 + $0x1e8] sm:$0xff] %v631
        %649 = vst [vmem:[#allocation2 + $0x1f0] sm:$0xff] %v632
        %650 = vst [vmem:[#allocation2 + $0x1f8] sm:$0xff] %v633
        %651 = vrot.lane.b32.xlu0 %v289, 7
        %v652 = vpop.permute.xlu0 %651
        %654 = vrot.lane.b32.xlu0 %v276, 7
        %v655 = vpop.permute.xlu0 %654
        %656 = vrot.lane.b32.xlu0 %v277, 7
        %v657 = vpop.permute.xlu0 %656
        %658 = vrot.lane.b32.xlu0 %v278, 7
        %v659 = vpop.permute.xlu0 %658
        %660 = vrot.lane.b32.xlu0 %v279, 7
        %v661 = vpop.permute.xlu0 %660
        %662 = vrot.lane.b32.xlu0 %v280, 7
        %v663 = vpop.permute.xlu0 %662
        %664 = vrot.lane.b32.xlu0 %v281, 7
        %v665 = vpop.permute.xlu0 %664
        %666 = vrot.lane.b32.xlu0 %v282, 7
        %v667 = vpop.permute.xlu0 %666
        %668 = vrot.lane.b32.xlu0 %v283, 7
        %v669 = vpop.permute.xlu0 %668
        %vm670 = vcmask 56320
        %v671 = vsel %vm670, %v655, %v657
        %v672 = vsel %vm670, %v657, %v659
        %v673 = vsel %vm670, %v659, %v661
        %v674 = vsel %vm670, %v661, %v663
        %v675 = vsel %vm670, %v663, %v665
        %v676 = vsel %vm670, %v665, %v667
        %v677 = vsel %vm670, %v667, %v669
        %v686 = vsel %vm670, %v652, %v655
        %687 = vst [vmem:[#allocation2 + $0x200] sm:$0xff] %v686
        %688 = vst [vmem:[#allocation2 + $0x208] sm:$0xff] %v671
        %689 = vst [vmem:[#allocation2 + $0x210] sm:$0xff] %v672
        %690 = vst [vmem:[#allocation2 + $0x218] sm:$0xff] %v673
        %691 = vst [vmem:[#allocation2 + $0x220] sm:$0xff] %v674
        %692 = vst [vmem:[#allocation2 + $0x228] sm:$0xff] %v675
        %693 = vst [vmem:[#allocation2 + $0x230] sm:$0xff] %v676
        %694 = vst [vmem:[#allocation2 + $0x238] sm:$0xff] %v677
        %695 = vrot.lane.b32.xlu0 %v289, 6
        %v696 = vpop.permute.xlu0 %695
        %698 = vrot.lane.b32.xlu0 %v276, 6
        %v699 = vpop.permute.xlu0 %698
        %700 = vrot.lane.b32.xlu0 %v277, 6
        %v701 = vpop.permute.xlu0 %700
        %702 = vrot.lane.b32.xlu0 %v278, 6
        %v703 = vpop.permute.xlu0 %702
        %704 = vrot.lane.b32.xlu0 %v279, 6
        %v705 = vpop.permute.xlu0 %704
        %706 = vrot.lane.b32.xlu0 %v280, 6
        %v707 = vpop.permute.xlu0 %706
        %708 = vrot.lane.b32.xlu0 %v281, 6
        %v709 = vpop.permute.xlu0 %708
        %710 = vrot.lane.b32.xlu0 %v282, 6
        %v711 = vpop.permute.xlu0 %710
        %712 = vrot.lane.b32.xlu0 %v283, 6
        %v713 = vpop.permute.xlu0 %712
        %vm714 = vcmask 48128
        %v715 = vsel %vm714, %v699, %v701
        %v716 = vsel %vm714, %v701, %v703
        %v717 = vsel %vm714, %v703, %v705
        %v718 = vsel %vm714, %v705, %v707
        %v719 = vsel %vm714, %v707, %v709
        %v720 = vsel %vm714, %v709, %v711
        %v721 = vsel %vm714, %v711, %v713
        %v730 = vsel %vm714, %v696, %v699
        %731 = vst [vmem:[#allocation2 + $0x240] sm:$0xff] %v730
        %732 = vst [vmem:[#allocation2 + $0x248] sm:$0xff] %v715
        %733 = vst [vmem:[#allocation2 + $0x250] sm:$0xff] %v716
        %734 = vst [vmem:[#allocation2 + $0x258] sm:$0xff] %v717
        %735 = vst [vmem:[#allocation2 + $0x260] sm:$0xff] %v718
        %736 = vst [vmem:[#allocation2 + $0x268] sm:$0xff] %v719
        %737 = vst [vmem:[#allocation2 + $0x270] sm:$0xff] %v720
        %738 = vst [vmem:[#allocation2 + $0x278] sm:$0xff] %v721
        %739 = vrot.lane.b32.xlu0 %v289, 5
        %v740 = vpop.permute.xlu0 %739
        %742 = vrot.lane.b32.xlu0 %v276, 5
        %v743 = vpop.permute.xlu0 %742
        %744 = vrot.lane.b32.xlu0 %v277, 5
        %v745 = vpop.permute.xlu0 %744
        %746 = vrot.lane.b32.xlu0 %v278, 5
        %v747 = vpop.permute.xlu0 %746
        %748 = vrot.lane.b32.xlu0 %v279, 5
        %v749 = vpop.permute.xlu0 %748
        %750 = vrot.lane.b32.xlu0 %v280, 5
        %v751 = vpop.permute.xlu0 %750
        %752 = vrot.lane.b32.xlu0 %v281, 5
        %v753 = vpop.permute.xlu0 %752
        %754 = vrot.lane.b32.xlu0 %v282, 5
        %v755 = vpop.permute.xlu0 %754
        %756 = vrot.lane.b32.xlu0 %v283, 5
        %v757 = vpop.permute.xlu0 %756
        %vm758 = vcmask 39936
        %v759 = vsel %vm758, %v743, %v745
        %v760 = vsel %vm758, %v745, %v747
        %v761 = vsel %vm758, %v747, %v749
        %v762 = vsel %vm758, %v749, %v751
        %v763 = vsel %vm758, %v751, %v753
        %v764 = vsel %vm758, %v753, %v755
        %v765 = vsel %vm758, %v755, %v757
        %v774 = vsel %vm758, %v740, %v743
        %775 = vst [vmem:[#allocation2 + $0x280] sm:$0xff] %v774
        %776 = vst [vmem:[#allocation2 + $0x288] sm:$0xff] %v759
        %777 = vst [vmem:[#allocation2 + $0x290] sm:$0xff] %v760
        %778 = vst [vmem:[#allocation2 + $0x298] sm:$0xff] %v761
        %779 = vst [vmem:[#allocation2 + $0x2a0] sm:$0xff] %v762
        %780 = vst [vmem:[#allocation2 + $0x2a8] sm:$0xff] %v763
        %781 = vst [vmem:[#allocation2 + $0x2b0] sm:$0xff] %v764
        %782 = vst [vmem:[#allocation2 + $0x2b8] sm:$0xff] %v765
        %783 = vrot.lane.b32.xlu0 %v289, 4
        %v784 = vpop.permute.xlu0 %783
        %786 = vrot.lane.b32.xlu0 %v276, 4
        %v787 = vpop.permute.xlu0 %786
        %788 = vrot.lane.b32.xlu0 %v277, 4
        %v789 = vpop.permute.xlu0 %788
        %790 = vrot.lane.b32.xlu0 %v278, 4
        %v791 = vpop.permute.xlu0 %790
        %792 = vrot.lane.b32.xlu0 %v279, 4
        %v793 = vpop.permute.xlu0 %792
        %794 = vrot.lane.b32.xlu0 %v280, 4
        %v795 = vpop.permute.xlu0 %794
        %796 = vrot.lane.b32.xlu0 %v281, 4
        %v797 = vpop.permute.xlu0 %796
        %798 = vrot.lane.b32.xlu0 %v282, 4
        %v799 = vpop.permute.xlu0 %798
        %800 = vrot.lane.b32.xlu0 %v283, 4
        %v801 = vpop.permute.xlu0 %800
        %vm802 = vcmask 31744
        %v803 = vsel %vm802, %v787, %v789
        %v804 = vsel %vm802, %v789, %v791
        %v805 = vsel %vm802, %v791, %v793
        %v806 = vsel %vm802, %v793, %v795
        %v807 = vsel %vm802, %v795, %v797
        %v808 = vsel %vm802, %v797, %v799
        %v809 = vsel %vm802, %v799, %v801
        %v818 = vsel %vm802, %v784, %v787
        %819 = vst [vmem:[#allocation2 + $0x2c0] sm:$0xff] %v818
        %820 = vst [vmem:[#allocation2 + $0x2c8] sm:$0xff] %v803
        %821 = vst [vmem:[#allocation2 + $0x2d0] sm:$0xff] %v804
        %822 = vst [vmem:[#allocation2 + $0x2d8] sm:$0xff] %v805
        %823 = vst [vmem:[#allocation2 + $0x2e0] sm:$0xff] %v806
        %824 = vst [vmem:[#allocation2 + $0x2e8] sm:$0xff] %v807
        %825 = vst [vmem:[#allocation2 + $0x2f0] sm:$0xff] %v808
        %826 = vst [vmem:[#allocation2 + $0x2f8] sm:$0xff] %v809
        %827 = vrot.lane.b32.xlu0 %v289, 3
        %v828 = vpop.permute.xlu0 %827
        %830 = vrot.lane.b32.xlu0 %v276, 3
        %v831 = vpop.permute.xlu0 %830
        %832 = vrot.lane.b32.xlu0 %v277, 3
        %v833 = vpop.permute.xlu0 %832
        %834 = vrot.lane.b32.xlu0 %v278, 3
        %v835 = vpop.permute.xlu0 %834
        %836 = vrot.lane.b32.xlu0 %v279, 3
        %v837 = vpop.permute.xlu0 %836
        %838 = vrot.lane.b32.xlu0 %v280, 3
        %v839 = vpop.permute.xlu0 %838
        %840 = vrot.lane.b32.xlu0 %v281, 3
        %v841 = vpop.permute.xlu0 %840
        %842 = vrot.lane.b32.xlu0 %v282, 3
        %v843 = vpop.permute.xlu0 %842
        %844 = vrot.lane.b32.xlu0 %v283, 3
        %v845 = vpop.permute.xlu0 %844
        %vm846 = vcmask 23552
        %v847 = vsel %vm846, %v831, %v833
        %v848 = vsel %vm846, %v833, %v835
        %v849 = vsel %vm846, %v835, %v837
        %v850 = vsel %vm846, %v837, %v839
        %v851 = vsel %vm846, %v839, %v841
        %v852 = vsel %vm846, %v841, %v843
        %v853 = vsel %vm846, %v843, %v845
        %v862 = vsel %vm846, %v828, %v831
        %863 = vst [vmem:[#allocation2 + $0x300] sm:$0xff] %v862
        %864 = vst [vmem:[#allocation2 + $0x308] sm:$0xff] %v847
        %865 = vst [vmem:[#allocation2 + $0x310] sm:$0xff] %v848
        %866 = vst [vmem:[#allocation2 + $0x318] sm:$0xff] %v849
        %867 = vst [vmem:[#allocation2 + $0x320] sm:$0xff] %v850
        %868 = vst [vmem:[#allocation2 + $0x328] sm:$0xff] %v851
        %869 = vst [vmem:[#allocation2 + $0x330] sm:$0xff] %v852
        %870 = vst [vmem:[#allocation2 + $0x338] sm:$0xff] %v853
        %871 = vrot.lane.b32.xlu0 %v289, 2
        %v872 = vpop.permute.xlu0 %871
        %874 = vrot.lane.b32.xlu0 %v276, 2
        %v875 = vpop.permute.xlu0 %874
        %876 = vrot.lane.b32.xlu0 %v277, 2
        %v877 = vpop.permute.xlu0 %876
        %878 = vrot.lane.b32.xlu0 %v278, 2
        %v879 = vpop.permute.xlu0 %878
        %880 = vrot.lane.b32.xlu0 %v279, 2
        %v881 = vpop.permute.xlu0 %880
        %882 = vrot.lane.b32.xlu0 %v280, 2
        %v883 = vpop.permute.xlu0 %882
        %884 = vrot.lane.b32.xlu0 %v281, 2
        %v885 = vpop.permute.xlu0 %884
        %886 = vrot.lane.b32.xlu0 %v282, 2
        %v887 = vpop.permute.xlu0 %886
        %888 = vrot.lane.b32.xlu0 %v283, 2
        %v889 = vpop.permute.xlu0 %888
        %vm890 = vcmask 15360
        %v891 = vsel %vm890, %v875, %v877
        %v892 = vsel %vm890, %v877, %v879
        %v893 = vsel %vm890, %v879, %v881
        %v894 = vsel %vm890, %v881, %v883
        %v895 = vsel %vm890, %v883, %v885
        %v896 = vsel %vm890, %v885, %v887
        %v897 = vsel %vm890, %v887, %v889
        %v906 = vsel %vm890, %v872, %v875
        %907 = vst [vmem:[#allocation2 + $0x340] sm:$0xff] %v906
        %908 = vst [vmem:[#allocation2 + $0x348] sm:$0xff] %v891
        %909 = vst [vmem:[#allocation2 + $0x350] sm:$0xff] %v892
        %910 = vst [vmem:[#allocation2 + $0x358] sm:$0xff] %v893
        %911 = vst [vmem:[#allocation2 + $0x360] sm:$0xff] %v894
        %912 = vst [vmem:[#allocation2 + $0x368] sm:$0xff] %v895
        %913 = vst [vmem:[#allocation2 + $0x370] sm:$0xff] %v896
        %914 = vst [vmem:[#allocation2 + $0x378] sm:$0xff] %v897
        %915 = vrot.lane.b32.xlu0 %v289, 1
        %v916 = vpop.permute.xlu0 %915
        %918 = vrot.lane.b32.xlu0 %v276, 1
        %v919 = vpop.permute.xlu0 %918
        %920 = vrot.lane.b32.xlu0 %v277, 1
        %v921 = vpop.permute.xlu0 %920
        %922 = vrot.lane.b32.xlu0 %v278, 1
        %v923 = vpop.permute.xlu0 %922
        %924 = vrot.lane.b32.xlu0 %v279, 1
        %v925 = vpop.permute.xlu0 %924
        %926 = vrot.lane.b32.xlu0 %v280, 1
        %v927 = vpop.permute.xlu0 %926
        %928 = vrot.lane.b32.xlu0 %v281, 1
        %v929 = vpop.permute.xlu0 %928
        %930 = vrot.lane.b32.xlu0 %v282, 1
        %v931 = vpop.permute.xlu0 %930
        %932 = vrot.lane.b32.xlu0 %v283, 1
        %v933 = vpop.permute.xlu0 %932
        %vm934 = vcmask 7168
        %v935 = vsel %vm934, %v919, %v921
        %v936 = vsel %vm934, %v921, %v923
        %v937 = vsel %vm934, %v923, %v925
        %v938 = vsel %vm934, %v925, %v927
        %v939 = vsel %vm934, %v927, %v929
        %v940 = vsel %vm934, %v929, %v931
        %v941 = vsel %vm934, %v931, %v933
        %v950 = vsel %vm934, %v916, %v919
        %951 = vst [vmem:[#allocation2 + $0x380] sm:$0xff] %v950
        %952 = vst [vmem:[#allocation2 + $0x388] sm:$0xff] %v935
        %953 = vst [vmem:[#allocation2 + $0x390] sm:$0xff] %v936
        %954 = vst [vmem:[#allocation2 + $0x398] sm:$0xff] %v937
        %955 = vst [vmem:[#allocation2 + $0x3a0] sm:$0xff] %v938
        %956 = vst [vmem:[#allocation2 + $0x3a8] sm:$0xff] %v939
        %957 = vst [vmem:[#allocation2 + $0x3b0] sm:$0xff] %v940
        %958 = vst [vmem:[#allocation2 + $0x3b8] sm:$0xff] %v941
        %959 = vst [vmem:[#allocation2 + $0x3c0] sm:$0xff] %v276
        %960 = vst [vmem:[#allocation2 + $0x3c8] sm:$0xff] %v277
        %961 = vst [vmem:[#allocation2 + $0x3d0] sm:$0xff] %v278
        %962 = vst [vmem:[#allocation2 + $0x3d8] sm:$0xff] %v279
        %963 = vst [vmem:[#allocation2 + $0x3e0] sm:$0xff] %v280
        %964 = vst [vmem:[#allocation2 + $0x3e8] sm:$0xff] %v281
        %965 = vst [vmem:[#allocation2 + $0x3f0] sm:$0xff] %v282
        %966 = vst [vmem:[#allocation2 + $0x3f8] sm:$0xff] %v283
        %v967 = vld [vmem:[#allocation8] sm:$0xff]
        %v968 = vld [vmem:[#allocation2] sm:$0xff]
        %v969 = vld [vmem:[#allocation2 + $0x8] sm:$0xff]
        %v970 = vld [vmem:[#allocation2 + $0x10] sm:$0xff]
        %v971 = vld [vmem:[#allocation2 + $0x18] sm:$0xff]
        %v972 = vld [vmem:[#allocation2 + $0x20] sm:$0xff]
        %v973 = vld [vmem:[#allocation2 + $0x28] sm:$0xff]
        %v974 = vld [vmem:[#allocation2 + $0x30] sm:$0xff]
        %v975 = vld [vmem:[#allocation2 + $0x38] sm:$0xff]
        %v976 = vld [vmem:[#allocation2 + $0x40] sm:$0xff]
        %v977 = vld [vmem:[#allocation2 + $0x48] sm:$0xff]
        %v978 = vld [vmem:[#allocation2 + $0x50] sm:$0xff]
        %v979 = vld [vmem:[#allocation2 + $0x58] sm:$0xff]
        %v980 = vld [vmem:[#allocation2 + $0x60] sm:$0xff]
        %v981 = vld [vmem:[#allocation2 + $0x68] sm:$0xff]
        %v982 = vld [vmem:[#allocation2 + $0x70] sm:$0xff]
        %v983 = vld [vmem:[#allocation2 + $0x78] sm:$0xff]
        %v984 = vld [vmem:[#allocation2 + $0x80] sm:$0xff]
        %v985 = vld [vmem:[#allocation2 + $0x88] sm:$0xff]
        %v986 = vld [vmem:[#allocation2 + $0x90] sm:$0xff]
        %v987 = vld [vmem:[#allocation2 + $0x98] sm:$0xff]
        %v988 = vld [vmem:[#allocation2 + $0xa0] sm:$0xff]
        %v989 = vld [vmem:[#allocation2 + $0xa8] sm:$0xff]
        %v990 = vld [vmem:[#allocation2 + $0xb0] sm:$0xff]
        %v991 = vld [vmem:[#allocation2 + $0xb8] sm:$0xff]
        %v992 = vld [vmem:[#allocation2 + $0xc0] sm:$0xff]
        %v993 = vld [vmem:[#allocation2 + $0xc8] sm:$0xff]
        %v994 = vld [vmem:[#allocation2 + $0xd0] sm:$0xff]
        %v995 = vld [vmem:[#allocation2 + $0xd8] sm:$0xff]
        %v996 = vld [vmem:[#allocation2 + $0xe0] sm:$0xff]
        %v997 = vld [vmem:[#allocation2 + $0xe8] sm:$0xff]
        %v998 = vld [vmem:[#allocation2 + $0xf0] sm:$0xff]
        %v999 = vld [vmem:[#allocation2 + $0xf8] sm:$0xff]
        %v1000 = vld [vmem:[#allocation2 + $0x100] sm:$0xff]
        %v1001 = vld [vmem:[#allocation2 + $0x108] sm:$0xff]
        %v1002 = vld [vmem:[#allocation2 + $0x110] sm:$0xff]
        %v1003 = vld [vmem:[#allocation2 + $0x118] sm:$0xff]
        %v1004 = vld [vmem:[#allocation2 + $0x120] sm:$0xff]
        %v1005 = vld [vmem:[#allocation2 + $0x128] sm:$0xff]
        %v1006 = vld [vmem:[#allocation2 + $0x130] sm:$0xff]
        %v1007 = vld [vmem:[#allocation2 + $0x138] sm:$0xff]
        %v1008 = vld [vmem:[#allocation2 + $0x140] sm:$0xff]
        %v1009 = vld [vmem:[#allocation2 + $0x148] sm:$0xff]
        %v1010 = vld [vmem:[#allocation2 + $0x150] sm:$0xff]
        %v1011 = vld [vmem:[#allocation2 + $0x158] sm:$0xff]
        %v1012 = vld [vmem:[#allocation2 + $0x160] sm:$0xff]
        %v1013 = vld [vmem:[#allocation2 + $0x168] sm:$0xff]
        %v1014 = vld [vmem:[#allocation2 + $0x170] sm:$0xff]
        %v1015 = vld [vmem:[#allocation2 + $0x178] sm:$0xff]
        %v1016 = vld [vmem:[#allocation2 + $0x180] sm:$0xff]
        %v1017 = vld [vmem:[#allocation2 + $0x188] sm:$0xff]
        %v1018 = vld [vmem:[#allocation2 + $0x190] sm:$0xff]
        %v1019 = vld [vmem:[#allocation2 + $0x198] sm:$0xff]
        %v1020 = vld [vmem:[#allocation2 + $0x1a0] sm:$0xff]
        %v1021 = vld [vmem:[#allocation2 + $0x1a8] sm:$0xff]
        %v1022 = vld [vmem:[#allocation2 + $0x1b0] sm:$0xff]
        %v1023 = vld [vmem:[#allocation2 + $0x1b8] sm:$0xff]
        %v1024 = vld [vmem:[#allocation2 + $0x1c0] sm:$0xff]
        %v1025 = vld [vmem:[#allocation2 + $0x1c8] sm:$0xff]
        %v1026 = vld [vmem:[#allocation2 + $0x1d0] sm:$0xff]
        %v1027 = vld [vmem:[#allocation2 + $0x1d8] sm:$0xff]
        %v1028 = vld [vmem:[#allocation2 + $0x1e0] sm:$0xff]
        %v1029 = vld [vmem:[#allocation2 + $0x1e8] sm:$0xff]
        %v1030 = vld [vmem:[#allocation2 + $0x1f0] sm:$0xff]
        %v1031 = vld [vmem:[#allocation2 + $0x1f8] sm:$0xff]
        %v1032 = vld [vmem:[#allocation2 + $0x200] sm:$0xff]
        %v1033 = vld [vmem:[#allocation2 + $0x208] sm:$0xff]
        %v1034 = vld [vmem:[#allocation2 + $0x210] sm:$0xff]
        %v1035 = vld [vmem:[#allocation2 + $0x218] sm:$0xff]
        %v1036 = vld [vmem:[#allocation2 + $0x220] sm:$0xff]
        %v1037 = vld [vmem:[#allocation2 + $0x228] sm:$0xff]
        %v1038 = vld [vmem:[#allocation2 + $0x230] sm:$0xff]
        %v1039 = vld [vmem:[#allocation2 + $0x238] sm:$0xff]
        %v1040 = vld [vmem:[#allocation2 + $0x240] sm:$0xff]
        %v1041 = vld [vmem:[#allocation2 + $0x248] sm:$0xff]
        %v1042 = vld [vmem:[#allocation2 + $0x250] sm:$0xff]
        %v1043 = vld [vmem:[#allocation2 + $0x258] sm:$0xff]
        %v1044 = vld [vmem:[#allocation2 + $0x260] sm:$0xff]
        %v1045 = vld [vmem:[#allocation2 + $0x268] sm:$0xff]
        %v1046 = vld [vmem:[#allocation2 + $0x270] sm:$0xff]
        %v1047 = vld [vmem:[#allocation2 + $0x278] sm:$0xff]
        %v1048 = vld [vmem:[#allocation2 + $0x280] sm:$0xff]
        %v1049 = vld [vmem:[#allocation2 + $0x288] sm:$0xff]
        %v1050 = vld [vmem:[#allocation2 + $0x290] sm:$0xff]
        %v1051 = vld [vmem:[#allocation2 + $0x298] sm:$0xff]
        %v1052 = vld [vmem:[#allocation2 + $0x2a0] sm:$0xff]
        %v1053 = vld [vmem:[#allocation2 + $0x2a8] sm:$0xff]
        %v1054 = vld [vmem:[#allocation2 + $0x2b0] sm:$0xff]
        %v1055 = vld [vmem:[#allocation2 + $0x2b8] sm:$0xff]
        %v1056 = vld [vmem:[#allocation2 + $0x2c0] sm:$0xff]
        %v1057 = vld [vmem:[#allocation2 + $0x2c8] sm:$0xff]
        %v1058 = vld [vmem:[#allocation2 + $0x2d0] sm:$0xff]
        %v1059 = vld [vmem:[#allocation2 + $0x2d8] sm:$0xff]
        %v1060 = vld [vmem:[#allocation2 + $0x2e0] sm:$0xff]
        %v1061 = vld [vmem:[#allocation2 + $0x2e8] sm:$0xff]
        %v1062 = vld [vmem:[#allocation2 + $0x2f0] sm:$0xff]
        %v1063 = vld [vmem:[#allocation2 + $0x2f8] sm:$0xff]
        %v1064 = vld [vmem:[#allocation2 + $0x300] sm:$0xff]
        %v1065 = vld [vmem:[#allocation2 + $0x308] sm:$0xff]
        %v1066 = vld [vmem:[#allocation2 + $0x310] sm:$0xff]
        %v1067 = vld [vmem:[#allocation2 + $0x318] sm:$0xff]
        %v1068 = vld [vmem:[#allocation2 + $0x320] sm:$0xff]
        %v1069 = vld [vmem:[#allocation2 + $0x328] sm:$0xff]
        %v1070 = vld [vmem:[#allocation2 + $0x330] sm:$0xff]
        %v1071 = vld [vmem:[#allocation2 + $0x338] sm:$0xff]
        %v1072 = vld [vmem:[#allocation2 + $0x340] sm:$0xff]
        %v1073 = vld [vmem:[#allocation2 + $0x348] sm:$0xff]
        %v1074 = vld [vmem:[#allocation2 + $0x350] sm:$0xff]
        %v1075 = vld [vmem:[#allocation2 + $0x358] sm:$0xff]
        %v1076 = vld [vmem:[#allocation2 + $0x360] sm:$0xff]
        %v1077 = vld [vmem:[#allocation2 + $0x368] sm:$0xff]
        %v1078 = vld [vmem:[#allocation2 + $0x370] sm:$0xff]
        %v1079 = vld [vmem:[#allocation2 + $0x378] sm:$0xff]
        %v1080 = vld [vmem:[#allocation2 + $0x380] sm:$0xff]
        %v1081 = vld [vmem:[#allocation2 + $0x388] sm:$0xff]
        %v1082 = vld [vmem:[#allocation2 + $0x390] sm:$0xff]
        %v1083 = vld [vmem:[#allocation2 + $0x398] sm:$0xff]
        %v1084 = vld [vmem:[#allocation2 + $0x3a0] sm:$0xff]
        %v1085 = vld [vmem:[#allocation2 + $0x3a8] sm:$0xff]
        %v1086 = vld [vmem:[#allocation2 + $0x3b0] sm:$0xff]
        %v1087 = vld [vmem:[#allocation2 + $0x3b8] sm:$0xff]
        %v1088 = vld [vmem:[#allocation2 + $0x3c0] sm:$0xff]
        %v1089 = vld [vmem:[#allocation2 + $0x3c8] sm:$0xff]
        %v1090 = vld [vmem:[#allocation2 + $0x3d0] sm:$0xff]
        %v1091 = vld [vmem:[#allocation2 + $0x3d8] sm:$0xff]
        %v1092 = vld [vmem:[#allocation2 + $0x3e0] sm:$0xff]
        %v1093 = vld [vmem:[#allocation2 + $0x3e8] sm:$0xff]
        %v1094 = vld [vmem:[#allocation2 + $0x3f0] sm:$0xff]
        %v1095 = vld [vmem:[#allocation2 + $0x3f8] sm:$0xff]
        %1096 = vmatprep.subr.mxu0 %v1089
        %1097 = vmatpush1.msra.mxu0 %v1088
        %1098 = vmatprep.subr.mxu0 %v1081
        %1099 = vmatpush1.msra.mxu0 %v1080
        %1100 = vmatprep.subr.mxu0 %v1073
        %1101 = vmatpush1.msra.mxu0 %v1072
        %1102 = vmatprep.subr.mxu0 %v1065
        %1103 = vmatpush1.msra.mxu0 %v1064
        %1104 = vmatprep.subr.mxu0 %v1057
        %1105 = vmatpush1.msra.mxu0 %v1056
        %1106 = vmatprep.subr.mxu0 %v1049
        %1107 = vmatpush1.msra.mxu0 %v1048
        %1108 = vmatprep.subr.mxu0 %v1041
        %1109 = vmatpush1.msra.mxu0 %v1040
        %1110 = vmatprep.subr.mxu0 %v1033
        %1111 = vmatpush1.msra.mxu0 %v1032
        %1112 = vmatprep.subr.mxu0 %v1025
        %1113 = vmatpush1.msra.mxu0 %v1024
        %1114 = vmatprep.subr.mxu0 %v1017
        %1115 = vmatpush1.msra.mxu0 %v1016
        %1116 = vmatprep.subr.mxu0 %v1009
        %1117 = vmatpush1.msra.mxu0 %v1008
        %1118 = vmatprep.subr.mxu0 %v1001
        %1119 = vmatpush1.msra.mxu0 %v1000
        %1120 = vmatprep.subr.mxu0 %v993
        %1121 = vmatpush1.msra.mxu0 %v992
        %1122 = vmatprep.subr.mxu0 %v985
        %1123 = vmatpush1.msra.mxu0 %v984
        %1124 = vmatprep.subr.mxu0 %v977
        %1125 = vmatpush1.msra.mxu0 %v976
        %1126 = vmatprep.subr.mxu0 %v969
        %1127 = vmatpush1.msra.mxu0 %v968
        %1128 = vmatprep.subr.mxu0 0.0
        %1129 = vmatpush2.msra.mxu0 0.0
        %1130 = vmatprep.subr.mxu0 0.0
        %1131 = vmatpush2.msra.mxu0 0.0
        %1132 = vmatprep.subr.mxu0 0.0
        %1133 = vmatpush2.msra.mxu0 0.0
        %1134 = vmatprep.subr.mxu0 0.0
        %1135 = vmatpush2.msra.mxu0 0.0
        %1136 = vmatprep.subr.mxu0 0.0
        %1137 = vmatpush2.msra.mxu0 0.0
        %1138 = vmatprep.subr.mxu0 0.0
        %1139 = vmatpush2.msra.mxu0 0.0
        %1140 = vmatprep.subr.mxu0 0.0
        %1141 = vmatpush2.msra.mxu0 0.0
        %1142 = vmatprep.subr.mxu0 0.0
        %1143 = vmatpush2.msra.mxu0 0.0
        %1144 = vmatprep.subr.mxu0 0.0
        %1145 = vmatpush2.msra.mxu0 0.0
        %1146 = vmatprep.subr.mxu0 0.0
        %1147 = vmatpush2.msra.mxu0 0.0
        %1148 = vmatprep.subr.mxu0 0.0
        %1149 = vmatpush2.msra.mxu0 0.0
        %1150 = vmatprep.subr.mxu0 0.0
        %1151 = vmatpush2.msra.mxu0 0.0
        %1152 = vmatprep.subr.mxu0 0.0
        %1153 = vmatpush2.msra.mxu0 0.0
        %1154 = vmatprep.subr.mxu0 0.0
        %1155 = vmatpush2.msra.mxu0 0.0
        %1156 = vmatprep.subr.mxu0 0.0
        %1157 = vmatpush2.msra.mxu0 0.0
        %1158 = vmatprep.subr.mxu0 0.0
        %1159 = vmatpush2.msra.mxu0 0.0
        %1160 = vmatprep.mubr.f32.mxu0 0.0
        %1161 = vmatmul.mubr.f32.gmra.mxu0 %v967
        %v1162 = vpop.f32.mrf.mxu0
        %v1163 = vadd.f32 0.0, %v1162
        %v1164 = vpop.f32.mrf.mxu0
        %v1165 = vadd.f32 0.0, %v1164
        %1166 = vdwg.mxu0
        %1167 = vmatprep.subr.mxu0 %v1091
        %1168 = vmatpush1.msra.mxu0 %v1090
        %1169 = vmatprep.subr.mxu0 %v1083
        %1170 = vmatpush1.msra.mxu0 %v1082
        %1171 = vmatprep.subr.mxu0 %v1075
        %1172 = vmatpush1.msra.mxu0 %v1074
        %1173 = vmatprep.subr.mxu0 %v1067
        %1174 = vmatpush1.msra.mxu0 %v1066
        %1175 = vmatprep.subr.mxu0 %v1059
        %1176 = vmatpush1.msra.mxu0 %v1058
        %1177 = vmatprep.subr.mxu0 %v1051
        %1178 = vmatpush1.msra.mxu0 %v1050
        %1179 = vmatprep.subr.mxu0 %v1043
        %1180 = vmatpush1.msra.mxu0 %v1042
        %1181 = vmatprep.subr.mxu0 %v1035
        %1182 = vmatpush1.msra.mxu0 %v1034
        %1183 = vmatprep.subr.mxu0 %v1027
        %1184 = vmatpush1.msra.mxu0 %v1026
        %1185 = vmatprep.subr.mxu0 %v1019
        %1186 = vmatpush1.msra.mxu0 %v1018
        %1187 = vmatprep.subr.mxu0 %v1011
        %1188 = vmatpush1.msra.mxu0 %v1010
        %1189 = vmatprep.subr.mxu0 %v1003
        %1190 = vmatpush1.msra.mxu0 %v1002
        %1191 = vmatprep.subr.mxu0 %v995
        %1192 = vmatpush1.msra.mxu0 %v994
        %1193 = vmatprep.subr.mxu0 %v987
        %1194 = vmatpush1.msra.mxu0 %v986
        %1195 = vmatprep.subr.mxu0 %v979
        %1196 = vmatpush1.msra.mxu0 %v978
        %1197 = vmatprep.subr.mxu0 %v971
        %1198 = vmatpush1.msra.mxu0 %v970
        %1199 = vmatprep.subr.mxu0 0.0
        %1200 = vmatpush2.msra.mxu0 0.0
        %1201 = vmatprep.subr.mxu0 0.0
        %1202 = vmatpush2.msra.mxu0 0.0
        %1203 = vmatprep.subr.mxu0 0.0
        %1204 = vmatpush2.msra.mxu0 0.0
        %1205 = vmatprep.subr.mxu0 0.0
        %1206 = vmatpush2.msra.mxu0 0.0
        %1207 = vmatprep.subr.mxu0 0.0
        %1208 = vmatpush2.msra.mxu0 0.0
        %1209 = vmatprep.subr.mxu0 0.0
        %1210 = vmatpush2.msra.mxu0 0.0
        %1211 = vmatprep.subr.mxu0 0.0
        %1212 = vmatpush2.msra.mxu0 0.0
        %1213 = vmatprep.subr.mxu0 0.0
        %1214 = vmatpush2.msra.mxu0 0.0
        %1215 = vmatprep.subr.mxu0 0.0
        %1216 = vmatpush2.msra.mxu0 0.0
        %1217 = vmatprep.subr.mxu0 0.0
        %1218 = vmatpush2.msra.mxu0 0.0
        %1219 = vmatprep.subr.mxu0 0.0
        %1220 = vmatpush2.msra.mxu0 0.0
        %1221 = vmatprep.subr.mxu0 0.0
        %1222 = vmatpush2.msra.mxu0 0.0
        %1223 = vmatprep.subr.mxu0 0.0
        %1224 = vmatpush2.msra.mxu0 0.0
        %1225 = vmatprep.subr.mxu0 0.0
        %1226 = vmatpush2.msra.mxu0 0.0
        %1227 = vmatprep.subr.mxu0 0.0
        %1228 = vmatpush2.msra.mxu0 0.0
        %1229 = vmatprep.subr.mxu0 0.0
        %1230 = vmatpush2.msra.mxu0 0.0
        %1231 = vmatprep.mubr.f32.mxu0 0.0
        %1232 = vmatmul.mubr.f32.gmra.mxu0 %v967
        %v1233 = vpop.f32.mrf.mxu0
        %v1234 = vadd.f32 0.0, %v1233
        %v1235 = vpop.f32.mrf.mxu0
        %v1236 = vadd.f32 0.0, %v1235
        %1237 = vdwg.mxu0
        %1238 = vmatprep.subr.mxu0 %v1093
        %1239 = vmatpush1.msra.mxu0 %v1092
        %1240 = vmatprep.subr.mxu0 %v1085
        %1241 = vmatpush1.msra.mxu0 %v1084
        %1242 = vmatprep.subr.mxu0 %v1077
        %1243 = vmatpush1.msra.mxu0 %v1076
        %1244 = vmatprep.subr.mxu0 %v1069
        %1245 = vmatpush1.msra.mxu0 %v1068
        %1246 = vmatprep.subr.mxu0 %v1061
        %1247 = vmatpush1.msra.mxu0 %v1060
        %1248 = vmatprep.subr.mxu0 %v1053
        %1249 = vmatpush1.msra.mxu0 %v1052
        %1250 = vmatprep.subr.mxu0 %v1045
        %1251 = vmatpush1.msra.mxu0 %v1044
        %1252 = vmatprep.subr.mxu0 %v1037
        %1253 = vmatpush1.msra.mxu0 %v1036
        %1254 = vmatprep.subr.mxu0 %v1029
        %1255 = vmatpush1.msra.mxu0 %v1028
        %1256 = vmatprep.subr.mxu0 %v1021
        %1257 = vmatpush1.msra.mxu0 %v1020
        %1258 = vmatprep.subr.mxu0 %v1013
        %1259 = vmatpush1.msra.mxu0 %v1012
        %1260 = vmatprep.subr.mxu0 %v1005
        %1261 = vmatpush1.msra.mxu0 %v1004
        %1262 = vmatprep.subr.mxu0 %v997
        %1263 = vmatpush1.msra.mxu0 %v996
        %1264 = vmatprep.subr.mxu0 %v989
        %1265 = vmatpush1.msra.mxu0 %v988
        %1266 = vmatprep.subr.mxu0 %v981
        %1267 = vmatpush1.msra.mxu0 %v980
        %1268 = vmatprep.subr.mxu0 %v973
        %1269 = vmatpush1.msra.mxu0 %v972
        %1270 = vmatprep.subr.mxu0 0.0
        %1271 = vmatpush2.msra.mxu0 0.0
        %1272 = vmatprep.subr.mxu0 0.0
        %1273 = vmatpush2.msra.mxu0 0.0
        %1274 = vmatprep.subr.mxu0 0.0
        %1275 = vmatpush2.msra.mxu0 0.0
        %1276 = vmatprep.subr.mxu0 0.0
        %1277 = vmatpush2.msra.mxu0 0.0
        %1278 = vmatprep.subr.mxu0 0.0
        %1279 = vmatpush2.msra.mxu0 0.0
        %1280 = vmatprep.subr.mxu0 0.0
        %1281 = vmatpush2.msra.mxu0 0.0
        %1282 = vmatprep.subr.mxu0 0.0
        %1283 = vmatpush2.msra.mxu0 0.0
        %1284 = vmatprep.subr.mxu0 0.0
        %1285 = vmatpush2.msra.mxu0 0.0
        %1286 = vmatprep.subr.mxu0 0.0
        %1287 = vmatpush2.msra.mxu0 0.0
        %1288 = vmatprep.subr.mxu0 0.0
        %1289 = vmatpush2.msra.mxu0 0.0
        %1290 = vmatprep.subr.mxu0 0.0
        %1291 = vmatpush2.msra.mxu0 0.0
        %1292 = vmatprep.subr.mxu0 0.0
        %1293 = vmatpush2.msra.mxu0 0.0
        %1294 = vmatprep.subr.mxu0 0.0
        %1295 = vmatpush2.msra.mxu0 0.0
        %1296 = vmatprep.subr.mxu0 0.0
        %1297 = vmatpush2.msra.mxu0 0.0
        %1298 = vmatprep.subr.mxu0 0.0
        %1299 = vmatpush2.msra.mxu0 0.0
        %1300 = vmatprep.subr.mxu0 0.0
        %1301 = vmatpush2.msra.mxu0 0.0
        %1302 = vmatprep.mubr.f32.mxu0 0.0
        %1303 = vmatmul.mubr.f32.gmra.mxu0 %v967
        %v1304 = vpop.f32.mrf.mxu0
        %v1305 = vadd.f32 0.0, %v1304
        %v1306 = vpop.f32.mrf.mxu0
        %v1307 = vadd.f32 0.0, %v1306
        %1308 = vdwg.mxu0
        %1309 = vmatprep.subr.mxu0 %v1095
        %1310 = vmatpush1.msra.mxu0 %v1094
        %1311 = vmatprep.subr.mxu0 %v1087
        %1312 = vmatpush1.msra.mxu0 %v1086
        %1313 = vmatprep.subr.mxu0 %v1079
        %1314 = vmatpush1.msra.mxu0 %v1078
        %1315 = vmatprep.subr.mxu0 %v1071
        %1316 = vmatpush1.msra.mxu0 %v1070
        %1317 = vmatprep.subr.mxu0 %v1063
        %1318 = vmatpush1.msra.mxu0 %v1062
        %1319 = vmatprep.subr.mxu0 %v1055
        %1320 = vmatpush1.msra.mxu0 %v1054
        %1321 = vmatprep.subr.mxu0 %v1047
        %1322 = vmatpush1.msra.mxu0 %v1046
        %1323 = vmatprep.subr.mxu0 %v1039
        %1324 = vmatpush1.msra.mxu0 %v1038
        %1325 = vmatprep.subr.mxu0 %v1031
        %1326 = vmatpush1.msra.mxu0 %v1030
        %1327 = vmatprep.subr.mxu0 %v1023
        %1328 = vmatpush1.msra.mxu0 %v1022
        %1329 = vmatprep.subr.mxu0 %v1015
        %1330 = vmatpush1.msra.mxu0 %v1014
        %1331 = vmatprep.subr.mxu0 %v1007
        %1332 = vmatpush1.msra.mxu0 %v1006
        %1333 = vmatprep.subr.mxu0 %v999
        %1334 = vmatpush1.msra.mxu0 %v998
        %1335 = vmatprep.subr.mxu0 %v991
        %1336 = vmatpush1.msra.mxu0 %v990
        %1337 = vmatprep.subr.mxu0 %v983
        %1338 = vmatpush1.msra.mxu0 %v982
        %1339 = vmatprep.subr.mxu0 %v975
        %1340 = vmatpush1.msra.mxu0 %v974
        %1341 = vmatprep.subr.mxu0 0.0
        %1342 = vmatpush2.msra.mxu0 0.0
        %1343 = vmatprep.subr.mxu0 0.0
        %1344 = vmatpush2.msra.mxu0 0.0
        %1345 = vmatprep.subr.mxu0 0.0
        %1346 = vmatpush2.msra.mxu0 0.0
        %1347 = vmatprep.subr.mxu0 0.0
        %1348 = vmatpush2.msra.mxu0 0.0
        %1349 = vmatprep.subr.mxu0 0.0
        %1350 = vmatpush2.msra.mxu0 0.0
        %1351 = vmatprep.subr.mxu0 0.0
        %1352 = vmatpush2.msra.mxu0 0.0
        %1353 = vmatprep.subr.mxu0 0.0
        %1354 = vmatpush2.msra.mxu0 0.0
        %1355 = vmatprep.subr.mxu0 0.0
        %1356 = vmatpush2.msra.mxu0 0.0
        %1357 = vmatprep.subr.mxu0 0.0
        %1358 = vmatpush2.msra.mxu0 0.0
        %1359 = vmatprep.subr.mxu0 0.0
        %1360 = vmatpush2.msra.mxu0 0.0
        %1361 = vmatprep.subr.mxu0 0.0
        %1362 = vmatpush2.msra.mxu0 0.0
        %1363 = vmatprep.subr.mxu0 0.0
        %1364 = vmatpush2.msra.mxu0 0.0
        %1365 = vmatprep.subr.mxu0 0.0
        %1366 = vmatpush2.msra.mxu0 0.0
        %1367 = vmatprep.subr.mxu0 0.0
        %1368 = vmatpush2.msra.mxu0 0.0
        %1369 = vmatprep.subr.mxu0 0.0
        %1370 = vmatpush2.msra.mxu0 0.0
        %1371 = vmatprep.subr.mxu0 0.0
        %1372 = vmatpush2.msra.mxu0 0.0
        %1373 = vmatprep.mubr.f32.mxu0 0.0
        %1374 = vmatmul.mubr.f32.gmra.mxu0 %v967
        %v1375 = vpop.f32.mrf.mxu0
        %v1376 = vadd.f32 0.0, %v1375
        %v1377 = vpop.f32.mrf.mxu0
        %v1378 = vadd.f32 0.0, %v1377
        %1379 = vdwg.mxu0
        %1380 = vst [vmem:[%s269] sm:$0xff] %v1163
        %1381 = vst [vmem:[%s269 + $0x8] sm:$0xff] %v1165
        %1382 = vst [vmem:[%s269 + $0x10] sm:$0xff] %v1234
        %1383 = vst [vmem:[%s269 + $0x18] sm:$0xff] %v1236
        %1384 = vst [vmem:[%s269 + $0x20] sm:$0xff] %v1305
        %1385 = vst [vmem:[%s269 + $0x28] sm:$0xff] %v1307
        %1386 = vst [vmem:[%s269 + $0x30] sm:$0xff] %v1376
        %1387 = vst [vmem:[%s269 + $0x38] sm:$0xff] %v1378
        %s1388 = sand.u32 %s130, 1
        %s1389 = scalar_lea.sflag [#allocation5], %s1388
        %s1390 = sand.u32 %s130, 1
        %s1391 = smul.addr %s1390, 64
        %s1392 = scalar_lea.vmem [#allocation9], %s1391
        // Predicated region
        $region45: #{tpu_custom_call.1} parent=31 // pred_check
          %p1393 = pneg %p140
        $region46: #{tpu_custom_call.1} parent=31 // pred_check_branch
          %1395 = sbr.rel (%p1393) target = $region48
        $region47: #{tpu_custom_call.1} parent=31 // pred_region
          %s1396 = smul.u32 8, %s28
          %s1398 = ssub.s32 1024, 1024
          %1399 = vsyncadd %s1389, %s1398
          %s1400 = smul.addr %s27, 16
          %s1401 = sadd.s32 %s1396, %s1400
          %s1402 = smul.addr %s1401, 128
          %s1403 = scalar_lea.hbm %s3, %s1402
          %s1405 = sshll.u32 %s1392, 4
          %s1406 = int_to_ptr.vmem [resolvable:$true] %s1405
          %1408 = dma.vmem_to_hbm [thread:$0]  %s1406, 1024, %s1403, %s1389
        $region48: #{tpu_custom_call.1} parent=31 // pred_fallthru
          _
      $region32: #{tpu_custom_call.1} parent=5 // pred_fallthru
        _
      %p1409 = scmp.le.s32.totalorder 2, %s18
      // Predicated region
      $region49: #{tpu_custom_call.1} parent=5 // pred_check
        %p1410 = pneg %p1409
      $region50: #{tpu_custom_call.1} parent=5 // pred_check_branch
        %1412 = sbr.rel (%p1410) target = $region52
      $region51: #{tpu_custom_call.1} parent=5 // pred_region
        %s1413 = ssub.s32 %s18, 2
        // Predicated region
        $region53: #{tpu_custom_call.1} parent=51 // pred_check
          %p1414 = pneg %p146
        $region54: #{tpu_custom_call.1} parent=51 // pred_check_branch
          %1416 = sbr.rel (%p1414) target = $region56
        $region55: #{tpu_custom_call.1} parent=51 // pred_region
          %s1417 = sand.u32 %s131, 1
          %s1418 = scalar_lea.sflag [#allocation5], %s1417
          %s1419 = sand.u32 %s131, 1
          %s1420 = smul.addr %s1419, 64
          %s1421 = scalar_lea.vmem [#allocation9], %s1420
          %1422 = dma.done %s1418, 1024
        $region56: #{tpu_custom_call.1} parent=51 // pred_fallthru
          _
      $region52: #{tpu_custom_call.1} parent=5 // pred_fallthru
        _
    $region6: #{tpu_custom_call.1} parent=1 // loop_footer
      %s22 = sadd.s32 1, %s18
    $region7: #{tpu_custom_call.1} parent=1 // loop_footer_branch
      %17 = sbr.rel target = $region3
    $region8: #{tpu_custom_call.1} parent=1 // loop_exit
      _
    %1423 = vsyncpa [#allocation4], 1
    %s1424 = scalar_lea.sflag [#allocation4], 1
    %1425 = vsyncpa %s1424, 1
    %1426 = vsyncpa [#allocation7], 1
    %s1427 = scalar_lea.sflag [#allocation7], 1
    %1428 = vsyncpa %s1427, 1
    %1429 = vsyncpa [#allocation5], 1
    %s1430 = scalar_lea.sflag [#allocation5], 1
    %1431 = vsyncpa %s1430, 1

</llo_original>
